<compile_context>
chip_gen: v7x
topology: tpu7x:2x2x1
jax: 0.10.0
libtpu: 0.0.40
codegen_flags: <defaults>
</compile_context>

<pallas_src>
import jax
import jax.numpy as jnp
from jax.experimental import pallas as pl
from jax.experimental.pallas import tpu as pltpu

# ----------------------- model hyper-parameters (small) ----------------------
N = 2            # batch
L = 8            # seq len (value_len == key_len == query_len)
E = 32           # embed_size
HEADS = 4
HEAD_DIM = E // HEADS
NH = N * HEADS
FWD_EXP = 2
HID = FWD_EXP * E
LN_EPS = 1e-5    # torch.nn.LayerNorm default

# ----------------- parameter-slab row layout (single (136,64) DMA) -----------
SLAB_W = HID                 # 64 lanes
R_BO, R_G1, R_B1, R_BF1, R_BF2, R_G2, R_B2 = 0, 1, 2, 3, 4, 5, 6
R_WO = 8                     # rows  8:40   fc_out weight   (E, E)   padded
R_W1 = R_WO + E              # rows 40:72   feed_forward[0] (E, HID)
R_W2 = R_W1 + E              # rows 72:136  feed_forward[2] (HID, E) padded
SLAB_ROWS = R_W2 + HID       # 136


# --------------------------------- kernel ------------------------------------
def encoder_block_kernel(qv_ref, kt_ref, qres_ref, par_ref, out_ref):
    # qv_ref:   (2, NH, L, HEAD_DIM)  stacked head-split q (slot 0) / v (slot 1)
    # kt_ref:   (NH, HEAD_DIM, L)     head-split, pre-transposed K
    # qres_ref: (N*L, E)              query, flattened, for the residual path
    # par_ref:  (SLAB_ROWS, SLAB_W)   packed parameters (see layout above)
    # out_ref:  (N*L, E)
    inv_scale = 1.0 / (HEAD_DIM ** 0.5)

    qh = qv_ref[0]                           # (NH, L, D) f32
    vh = qv_ref[1]                           # (NH, L, D) f32
    kt = kt_ref[...]                         # (NH, D, L) f32

    # ---- multi-head attention (no q/k/v projections, per reference code) ----
    energy = jnp.einsum("bqd,bdk->bqk", qh, kt,
                        preferred_element_type=jnp.float32) * inv_scale
    # TODO(synk): mask==0 -> -1e20 branch not implemented (module called with mask=None)
    energy = energy - jnp.max(energy, axis=-1, keepdims=True)
    p = jnp.exp(energy)
    p = p / jnp.sum(p, axis=-1, keepdims=True)

    ctx = jnp.einsum("bqk,bkd->bqd", p, vh,
                     preferred_element_type=jnp.float32)      # (NH, L, D)

    # ---- head-concat + fc_out: sum_h ctx[:, h] @ wo[h*D:(h+1)*D, :] ----------
    acc = jnp.zeros((N * L, E), jnp.float32)
    for h in range(HEADS):
        ctx_h = jnp.concatenate([ctx[b * HEADS + h] for b in range(N)], axis=0)  # (N*L, D)
        wo_h = par_ref[R_WO + h * HEAD_DIM:R_WO + (h + 1) * HEAD_DIM, :E]         # (D, E)
        acc = acc + jnp.dot(ctx_h, wo_h, preferred_element_type=jnp.float32)
    attn = acc + par_ref[R_BO:R_BO + 1, :E]

    # ---- residual + LayerNorm1 (dropout = identity in eval mode) ------------
    x = attn + qres_ref[...]
    mu = jnp.mean(x, axis=-1, keepdims=True)
    var = jnp.mean((x - mu) * (x - mu), axis=-1, keepdims=True)
    x = (x - mu) * jax.lax.rsqrt(var + LN_EPS) \
        * par_ref[R_G1:R_G1 + 1, :E] + par_ref[R_B1:R_B1 + 1, :E]

    # ---- feed forward (f32) ---------------------------------------------------
    w1 = par_ref[R_W1:R_W1 + E, :HID]                 # (E, HID)
    w2 = par_ref[R_W2:R_W2 + HID, :E]                 # (HID, E)
    h1 = jnp.dot(x, w1, preferred_element_type=jnp.float32) \
        + par_ref[R_BF1:R_BF1 + 1, :HID]
    h1 = jnp.maximum(h1, 0.0)
    h2 = jnp.dot(h1, w2, preferred_element_type=jnp.float32) \
        + par_ref[R_BF2:R_BF2 + 1, :E]

    # ---- residual + LayerNorm2 (dropout = identity in eval mode) ------------
    y = h2 + x
    mu2 = jnp.mean(y, axis=-1, keepdims=True)
    var2 = jnp.mean((y - mu2) * (y - mu2), axis=-1, keepdims=True)
    out_ref[...] = (y - mu2) * jax.lax.rsqrt(var2 + LN_EPS) \
        * par_ref[R_G2:R_G2 + 1, :E] + par_ref[R_B2:R_B2 + 1, :E]


# -------------------------------- wrapper ------------------------------------
@jax.jit
def transformer_encoder_block(value, key, query, params):
    n, l, e = query.shape
    nh = n * HEADS

    # Layout plumbing in plain XLA (outside the kernel).
    def to_heads(x):                                   # (N,L,E) -> (N*H, L, D), n-major
        return (x.reshape(n, l, HEADS, HEAD_DIM)
                 .transpose(0, 2, 1, 3)
                 .reshape(nh, l, HEAD_DIM))

    qv = jnp.stack([to_heads(query), to_heads(value)], axis=0)   # (2, NH, L, D)
    kt = to_heads(key).transpose(0, 2, 1)                        # (NH, D, L)
    q_flat = query.reshape(n * l, e)

    # Pack every parameter into one (SLAB_ROWS, SLAB_W) f32 slab (single DMA).
    def rowpad(a):
        return jnp.pad(a, ((0, 0), (0, SLAB_W - a.shape[-1])))

    slab = jnp.concatenate(
        [
            rowpad(params["bo"]), rowpad(params["g1"]), rowpad(params["b1"]),
            params["bf1"],
            rowpad(params["bf2"]), rowpad(params["g2"]), rowpad(params["b2"]),
            jnp.zeros((1, SLAB_W), jnp.float32),       # pad vector block to 8 rows
            rowpad(params["wo"]),                      # rows  8:40
            params["w1"],                              # rows 40:72
            rowpad(params["w2"]),                      # rows 72:136
        ],
        axis=0,
    )

    full = lambda shape: pl.BlockSpec(shape, lambda i, s=shape: (0,) * len(s))

    out = pl.pallas_call(
        encoder_block_kernel,
        out_shape=jax.ShapeDtypeStruct((n * l, e), jnp.float32),
        grid=(1,),                                     # single invocation
        in_specs=[
            full((2, nh, l, HEAD_DIM)),                # stacked q / v
            full((nh, HEAD_DIM, l)),                   # pre-transposed k
            full((n * l, e)),                          # query residual
            full((SLAB_ROWS, SLAB_W)),                 # packed parameters
        ],
        out_specs=full((n * l, e)),
        compiler_params=pltpu.CompilerParams(
            dimension_semantics=("arbitrary",)),
    )(qv, kt, q_flat, slab)
    return out.reshape(n, l, e)


# ---------------------------- pure-JAX reference ------------------------------
def reference(value, key, query, params):
    hp = jax.lax.Precision.HIGHEST
    q = query.reshape(N, L, HEADS, HEAD_DIM).transpose(2, 0, 1, 3)
    k = key.reshape(N, L, HEADS, HEAD_DIM).transpose(2, 0, 1, 3)
    v = value.reshape(N, L, HEADS, HEAD_DIM).transpose(2, 0, 1, 3)
    energy = jnp.einsum("hnqd,hnkd->hnqk", q, k, precision=hp)
    attn = jax.nn.softmax(energy / (HEAD_DIM ** 0.5), axis=-1)
    out = jnp.einsum("hnqk,hnkd->hnqd", attn, v, precision=hp)
    out = out.transpose(1, 2, 0, 3).reshape(N, L, E)
    out = jnp.dot(out, params["wo"], precision=hp) + params["bo"][0]

    def ln(x, g, b):
        mu = jnp.mean(x, -1, keepdims=True)
        var = jnp.mean((x - mu) ** 2, -1, keepdims=True)
        return (x - mu) / jnp.sqrt(var + LN_EPS) * g[0] + b[0]

    x = ln(out + query, params["g1"], params["b1"])
    h = jnp.maximum(jnp.dot(x, params["w1"], precision=hp) + params["bf1"][0], 0.0)
    ff = jnp.dot(h, params["w2"], precision=hp) + params["bf2"][0]
    return ln(ff + x, params["g2"], params["b2"])


# ----------------------------------- main -------------------------------------
if __name__ == "__main__":
    rng = jax.random.PRNGKey(0)
    kv, kk, kq, k1, k2, k3, k4, k5, k6 = jax.random.split(rng, 9)

    value = jax.random.normal(kv, (N, L, E), jnp.float32)
    key = jax.random.normal(kk, (N, L, E), jnp.float32)
    query = jax.random.normal(kq, (N, L, E), jnp.float32)

    # Deterministic synthetic parameters (Linear weights stored as (in, out)).
    params = {
        "wo": 0.1 * jax.random.normal(k1, (E, E), jnp.float32),
        "bo": 0.01 * jnp.ones((1, E), jnp.float32),
        "g1": jnp.ones((1, E), jnp.float32),
        "b1": jnp.zeros((1, E), jnp.float32),
        "w1": 0.1 * jax.random.normal(k2, (E, HID), jnp.float32),
        "bf1": 0.01 * jax.random.normal(k3, (1, HID), jnp.float32),
        "w2": 0.1 * jax.random.normal(k4, (HID, E), jnp.float32),
        "bf2": 0.01 * jax.random.normal(k5, (1, E), jnp.float32),
        "g2": 1.0 + 0.05 * jax.random.normal(k6, (1, E), jnp.float32),
        "b2": jnp.zeros((1, E), jnp.float32),
    }

    out = transformer_encoder_block(value, key, query, params)
    out = jax.block_until_ready(out)

    ref = reference(value, key, query, params)
    assert out.shape == (N, L, E)
    # f32 end-to-end (no bf16 casts, exact softmax division), so the check is
    # much tighter than the previous bf16 version.
    assert jnp.allclose(out, ref, atol=1e-3, rtol=1e-3), "mismatch vs reference"

    print("KERNEL_OK")
</pallas_src>

<mosaic_0001>
module attributes {stable_mosaic.version = 11 : i64} {
  func.func @encoder_block_kernel(%arg0: i32, %arg1: memref<2x8x8x8xf32, #tpu.memory_space<vmem>>, %arg2: memref<8x8x8xf32, #tpu.memory_space<vmem>>, %arg3: memref<16x32xf32, #tpu.memory_space<vmem>>, %arg4: memref<136x64xf32, #tpu.memory_space<vmem>>, %arg5: memref<16x32xf32, #tpu.memory_space<vmem>>) attributes {dimension_semantics = [#tpu.dimension_semantics<arbitrary>], iteration_bounds = array<i64: 1>, scalar_prefetch = 0 : i64, scratch_operands = 0 : i64, tpu.core_type = #tpu.core_type<tc>, window_params = [{pipeline_mode = #tpu.pipeline_mode<synchronous>, transform_indices = @transform_0, window_bounds = array<i64: 2, 8, 8, 8>}, {pipeline_mode = #tpu.pipeline_mode<synchronous>, transform_indices = @transform_1, window_bounds = array<i64: 8, 8, 8>}, {pipeline_mode = #tpu.pipeline_mode<synchronous>, transform_indices = @transform_2, window_bounds = array<i64: 16, 32>}, {pipeline_mode = #tpu.pipeline_mode<synchronous>, transform_indices = @transform_3, window_bounds = array<i64: 136, 64>}, {pipeline_mode = #tpu.pipeline_mode<synchronous>, transform_indices = @transform_4, window_bounds = array<i64: 16, 32>}]} {
    %c0 = arith.constant 0 : index
    %c0_0 = arith.constant 0 : index
    %c0_1 = arith.constant 0 : index
    %c0_2 = arith.constant 0 : index
    %0 = vector.load %arg1[%c0, %c0_0, %c0_1, %c0_2] : memref<2x8x8x8xf32, #tpu.memory_space<vmem>>, vector<1x8x8x8xf32>
    %1 = vector.shape_cast %0 : vector<1x8x8x8xf32> to vector<8x8x8xf32>
    %c1 = arith.constant 1 : index
    %c0_3 = arith.constant 0 : index
    %c0_4 = arith.constant 0 : index
    %c0_5 = arith.constant 0 : index
    %2 = vector.load %arg1[%c1, %c0_3, %c0_4, %c0_5] : memref<2x8x8x8xf32, #tpu.memory_space<vmem>>, vector<1x8x8x8xf32>
    %3 = vector.shape_cast %2 : vector<1x8x8x8xf32> to vector<8x8x8xf32>
    %c0_6 = arith.constant 0 : index
    %c0_7 = arith.constant 0 : index
    %c0_8 = arith.constant 0 : index
    %4 = vector.load %arg2[%c0_6, %c0_7, %c0_8] : memref<8x8x8xf32, #tpu.memory_space<vmem>>, vector<8x8x8xf32>
    "tpu.trace_start"() <{level = 10 : i32, message = "bqd,bdk->bqk"}> : () -> ()
    %cst = arith.constant dense<0.000000e+00> : vector<8x8x8xf32>
    %5 = tpu.matmul %1, %4, %cst {dimension_numbers = #tpu.dot_dimension_numbers<[2], [1], [1], [2], [0, 0, 0, 1, 1, 2], [0], [0]>} : vector<8x8x8xf32>, vector<8x8x8xf32>, vector<8x8x8xf32> -> vector<8x8x8xf32>
    "tpu.trace_stop"() : () -> ()
    %cst_9 = arith.constant 0.353553385 : f32
    %6 = vector.broadcast %cst_9 : f32 to vector<8x8x8xf32>
    %7 = arith.mulf %5, %6 : vector<8x8x8xf32>
    %cst_10 = arith.constant dense<0xFF800000> : vector<8x8xf32>
    %8 = vector.multi_reduction <maximumf>, %7, %cst_10 [2] : vector<8x8x8xf32> to vector<8x8xf32>
    %9 = vector.shape_cast %8 : vector<8x8xf32> to vector<8x8x1xf32>
    %10 = vector.broadcast %9 : vector<8x8x1xf32> to vector<8x8x8xf32>
    %11 = arith.subf %7, %10 : vector<8x8x8xf32>
    %12 = math.exp %11 : vector<8x8x8xf32>
    %cst_11 = arith.constant dense<0.000000e+00> : vector<8x8xf32>
    %13 = vector.multi_reduction <add>, %12, %cst_11 [2] : vector<8x8x8xf32> to vector<8x8xf32>
    %14 = vector.shape_cast %13 : vector<8x8xf32> to vector<8x8x1xf32>
    %15 = vector.broadcast %14 : vector<8x8x1xf32> to vector<8x8x8xf32>
    %16 = arith.divf %12, %15 : vector<8x8x8xf32>
    "tpu.trace_start"() <{level = 10 : i32, message = "bqk,bkd->bqd"}> : () -> ()
    %cst_12 = arith.constant dense<0.000000e+00> : vector<8x8x8xf32>
    %17 = tpu.matmul %16, %3, %cst_12 {dimension_numbers = #tpu.dot_dimension_numbers<[2], [1], [1], [2], [0, 0, 0, 1, 1, 2], [0], [0]>} : vector<8x8x8xf32>, vector<8x8x8xf32>, vector<8x8x8xf32> -> vector<8x8x8xf32>
    %cst_13 = arith.constant 0.000000e+00 : f32
    "tpu.trace_stop"() : () -> ()
    %18 = vector.broadcast %cst_13 : f32 to vector<16x32xf32>
    %19 = vector.extract_strided_slice %17 {offsets = [0, 0, 0], sizes = [1, 8, 8], strides = [1, 1, 1]} : vector<8x8x8xf32> to vector<1x8x8xf32>
    %20 = vector.shape_cast %19 : vector<1x8x8xf32> to vector<8x8xf32>
    %21 = vector.extract_strided_slice %17 {offsets = [4, 0, 0], sizes = [1, 8, 8], strides = [1, 1, 1]} : vector<8x8x8xf32> to vector<1x8x8xf32>
    %22 = vector.shape_cast %21 : vector<1x8x8xf32> to vector<8x8xf32>
    %23 = tpu.concatenate %20, %22 in 0 : vector<8x8xf32>, vector<8x8xf32> -> vector<16x8xf32>
    %c8 = arith.constant 8 : index
    %c0_14 = arith.constant 0 : index
    %24 = vector.load %arg4[%c8, %c0_14] : memref<136x64xf32, #tpu.memory_space<vmem>>, vector<8x32xf32>
    %cst_15 = arith.constant dense<0.000000e+00> : vector<16x32xf32>
    %25 = tpu.matmul %23, %24, %cst_15 {dimension_numbers = #tpu.dot_dimension_numbers<[1], [0], [0], [1], [0, 0, 1, 1], [], []>} : vector<16x8xf32>, vector<8x32xf32>, vector<16x32xf32> -> vector<16x32xf32>
    %26 = arith.addf %18, %25 : vector<16x32xf32>
    %27 = vector.extract_strided_slice %17 {offsets = [1, 0, 0], sizes = [1, 8, 8], strides = [1, 1, 1]} : vector<8x8x8xf32> to vector<1x8x8xf32>
    %28 = vector.shape_cast %27 : vector<1x8x8xf32> to vector<8x8xf32>
    %29 = vector.extract_strided_slice %17 {offsets = [5, 0, 0], sizes = [1, 8, 8], strides = [1, 1, 1]} : vector<8x8x8xf32> to vector<1x8x8xf32>
    %30 = vector.shape_cast %29 : vector<1x8x8xf32> to vector<8x8xf32>
    %31 = tpu.concatenate %28, %30 in 0 : vector<8x8xf32>, vector<8x8xf32> -> vector<16x8xf32>
    %c16 = arith.constant 16 : index
    %c0_16 = arith.constant 0 : index
    %32 = vector.load %arg4[%c16, %c0_16] : memref<136x64xf32, #tpu.memory_space<vmem>>, vector<8x32xf32>
    %cst_17 = arith.constant dense<0.000000e+00> : vector<16x32xf32>
    %33 = tpu.matmul %31, %32, %cst_17 {dimension_numbers = #tpu.dot_dimension_numbers<[1], [0], [0], [1], [0, 0, 1, 1], [], []>} : vector<16x8xf32>, vector<8x32xf32>, vector<16x32xf32> -> vector<16x32xf32>
    %34 = arith.addf %26, %33 : vector<16x32xf32>
    %35 = vector.extract_strided_slice %17 {offsets = [2, 0, 0], sizes = [1, 8, 8], strides = [1, 1, 1]} : vector<8x8x8xf32> to vector<1x8x8xf32>
    %36 = vector.shape_cast %35 : vector<1x8x8xf32> to vector<8x8xf32>
    %37 = vector.extract_strided_slice %17 {offsets = [6, 0, 0], sizes = [1, 8, 8], strides = [1, 1, 1]} : vector<8x8x8xf32> to vector<1x8x8xf32>
    %38 = vector.shape_cast %37 : vector<1x8x8xf32> to vector<8x8xf32>
    %39 = tpu.concatenate %36, %38 in 0 : vector<8x8xf32>, vector<8x8xf32> -> vector<16x8xf32>
    %c24 = arith.constant 24 : index
    %c0_18 = arith.constant 0 : index
    %40 = vector.load %arg4[%c24, %c0_18] : memref<136x64xf32, #tpu.memory_space<vmem>>, vector<8x32xf32>
    %cst_19 = arith.constant dense<0.000000e+00> : vector<16x32xf32>
    %41 = tpu.matmul %39, %40, %cst_19 {dimension_numbers = #tpu.dot_dimension_numbers<[1], [0], [0], [1], [0, 0, 1, 1], [], []>} : vector<16x8xf32>, vector<8x32xf32>, vector<16x32xf32> -> vector<16x32xf32>
    %42 = arith.addf %34, %41 : vector<16x32xf32>
    %43 = vector.extract_strided_slice %17 {offsets = [3, 0, 0], sizes = [1, 8, 8], strides = [1, 1, 1]} : vector<8x8x8xf32> to vector<1x8x8xf32>
    %44 = vector.shape_cast %43 : vector<1x8x8xf32> to vector<8x8xf32>
    %45 = vector.extract_strided_slice %17 {offsets = [7, 0, 0], sizes = [1, 8, 8], strides = [1, 1, 1]} : vector<8x8x8xf32> to vector<1x8x8xf32>
    %46 = vector.shape_cast %45 : vector<1x8x8xf32> to vector<8x8xf32>
    %47 = tpu.concatenate %44, %46 in 0 : vector<8x8xf32>, vector<8x8xf32> -> vector<16x8xf32>
    %c32 = arith.constant 32 : index
    %c0_20 = arith.constant 0 : index
    %48 = vector.load %arg4[%c32, %c0_20] : memref<136x64xf32, #tpu.memory_space<vmem>>, vector<8x32xf32>
    %cst_21 = arith.constant dense<0.000000e+00> : vector<16x32xf32>
    %49 = tpu.matmul %47, %48, %cst_21 {dimension_numbers = #tpu.dot_dimension_numbers<[1], [0], [0], [1], [0, 0, 1, 1], [], []>} : vector<16x8xf32>, vector<8x32xf32>, vector<16x32xf32> -> vector<16x32xf32>
    %50 = arith.addf %42, %49 : vector<16x32xf32>
    %c0_22 = arith.constant 0 : index
    %c0_23 = arith.constant 0 : index
    %51 = vector.load %arg4[%c0_22, %c0_23] : memref<136x64xf32, #tpu.memory_space<vmem>>, vector<1x32xf32>
    %52 = vector.broadcast %51 : vector<1x32xf32> to vector<16x32xf32>
    %53 = arith.addf %50, %52 : vector<16x32xf32>
    %c0_24 = arith.constant 0 : index
    %c0_25 = arith.constant 0 : index
    %54 = vector.load %arg3[%c0_24, %c0_25] : memref<16x32xf32, #tpu.memory_space<vmem>>, vector<16x32xf32>
    %55 = arith.addf %53, %54 : vector<16x32xf32>
    %cst_26 = arith.constant dense<0.000000e+00> : vector<16xf32>
    %56 = vector.multi_reduction <add>, %55, %cst_26 [1] : vector<16x32xf32> to vector<16xf32>
    %57 = vector.shape_cast %56 : vector<16xf32> to vector<16x1xf32>
    %cst_27 = arith.constant 3.200000e+01 : f32
    %58 = vector.broadcast %cst_27 : f32 to vector<16x1xf32>
    %59 = arith.divf %57, %58 : vector<16x1xf32>
    %60 = vector.broadcast %59 : vector<16x1xf32> to vector<16x32xf32>
    %61 = arith.subf %55, %60 : vector<16x32xf32>
    %62 = vector.broadcast %59 : vector<16x1xf32> to vector<16x32xf32>
    %63 = arith.subf %55, %62 : vector<16x32xf32>
    %64 = arith.mulf %61, %63 : vector<16x32xf32>
    %cst_28 = arith.constant dense<0.000000e+00> : vector<16xf32>
    %65 = vector.multi_reduction <add>, %64, %cst_28 [1] : vector<16x32xf32> to vector<16xf32>
    %66 = vector.shape_cast %65 : vector<16xf32> to vector<16x1xf32>
    %cst_29 = arith.constant 3.200000e+01 : f32
    %67 = vector.broadcast %cst_29 : f32 to vector<16x1xf32>
    %68 = arith.divf %66, %67 : vector<16x1xf32>
    %69 = vector.broadcast %59 : vector<16x1xf32> to vector<16x32xf32>
    %70 = arith.subf %55, %69 : vector<16x32xf32>
    %cst_30 = arith.constant 9.99999974E-6 : f32
    %71 = vector.broadcast %cst_30 : f32 to vector<16x1xf32>
    %72 = arith.addf %68, %71 : vector<16x1xf32>
    %73 = math.rsqrt %72 : vector<16x1xf32>
    %74 = vector.broadcast %73 : vector<16x1xf32> to vector<16x32xf32>
    %75 = arith.mulf %70, %74 : vector<16x32xf32>
    %c1_31 = arith.constant 1 : index
    %c0_32 = arith.constant 0 : index
    %76 = vector.load %arg4[%c1_31, %c0_32] : memref<136x64xf32, #tpu.memory_space<vmem>>, vector<1x32xf32>
    %77 = vector.broadcast %76 : vector<1x32xf32> to vector<16x32xf32>
    %78 = arith.mulf %75, %77 : vector<16x32xf32>
    %c2 = arith.constant 2 : index
    %c0_33 = arith.constant 0 : index
    %79 = vector.load %arg4[%c2, %c0_33] : memref<136x64xf32, #tpu.memory_space<vmem>>, vector<1x32xf32>
    %80 = vector.broadcast %79 : vector<1x32xf32> to vector<16x32xf32>
    %81 = arith.addf %78, %80 : vector<16x32xf32>
    %c40 = arith.constant 40 : index
    %c0_34 = arith.constant 0 : index
    %82 = vector.load %arg4[%c40, %c0_34] : memref<136x64xf32, #tpu.memory_space<vmem>>, vector<32x64xf32>
    %c72 = arith.constant 72 : index
    %c0_35 = arith.constant 0 : index
    %83 = vector.load %arg4[%c72, %c0_35] : memref<136x64xf32, #tpu.memory_space<vmem>>, vector<64x32xf32>
    %cst_36 = arith.constant dense<0.000000e+00> : vector<16x64xf32>
    %84 = tpu.matmul %81, %82, %cst_36 {dimension_numbers = #tpu.dot_dimension_numbers<[1], [0], [0], [1], [0, 0, 1, 1], [], []>} : vector<16x32xf32>, vector<32x64xf32>, vector<16x64xf32> -> vector<16x64xf32>
    %c3 = arith.constant 3 : index
    %c0_37 = arith.constant 0 : index
    %85 = vector.load %arg4[%c3, %c0_37] : memref<136x64xf32, #tpu.memory_space<vmem>>, vector<1x64xf32>
    %86 = vector.broadcast %85 : vector<1x64xf32> to vector<16x64xf32>
    %87 = arith.addf %84, %86 : vector<16x64xf32>
    %cst_38 = arith.constant 0.000000e+00 : f32
    %88 = vector.broadcast %cst_38 : f32 to vector<16x64xf32>
    %89 = arith.maximumf %87, %88 : vector<16x64xf32>
    %cst_39 = arith.constant dense<0.000000e+00> : vector<16x32xf32>
    %90 = tpu.matmul %89, %83, %cst_39 {dimension_numbers = #tpu.dot_dimension_numbers<[1], [0], [0], [1], [0, 0, 1, 1], [], []>} : vector<16x64xf32>, vector<64x32xf32>, vector<16x32xf32> -> vector<16x32xf32>
    %c4 = arith.constant 4 : index
    %c0_40 = arith.constant 0 : index
    %91 = vector.load %arg4[%c4, %c0_40] : memref<136x64xf32, #tpu.memory_space<vmem>>, vector<1x32xf32>
    %92 = vector.broadcast %91 : vector<1x32xf32> to vector<16x32xf32>
    %93 = arith.addf %90, %92 : vector<16x32xf32>
    %94 = arith.addf %93, %81 : vector<16x32xf32>
    %cst_41 = arith.constant dense<0.000000e+00> : vector<16xf32>
    %95 = vector.multi_reduction <add>, %94, %cst_41 [1] : vector<16x32xf32> to vector<16xf32>
    %96 = vector.shape_cast %95 : vector<16xf32> to vector<16x1xf32>
    %cst_42 = arith.constant 3.200000e+01 : f32
    %97 = vector.broadcast %cst_42 : f32 to vector<16x1xf32>
    %98 = arith.divf %96, %97 : vector<16x1xf32>
    %99 = vector.broadcast %98 : vector<16x1xf32> to vector<16x32xf32>
    %100 = arith.subf %94, %99 : vector<16x32xf32>
    %101 = vector.broadcast %98 : vector<16x1xf32> to vector<16x32xf32>
    %102 = arith.subf %94, %101 : vector<16x32xf32>
    %103 = arith.mulf %100, %102 : vector<16x32xf32>
    %cst_43 = arith.constant dense<0.000000e+00> : vector<16xf32>
    %104 = vector.multi_reduction <add>, %103, %cst_43 [1] : vector<16x32xf32> to vector<16xf32>
    %105 = vector.shape_cast %104 : vector<16xf32> to vector<16x1xf32>
    %cst_44 = arith.constant 3.200000e+01 : f32
    %106 = vector.broadcast %cst_44 : f32 to vector<16x1xf32>
    %107 = arith.divf %105, %106 : vector<16x1xf32>
    %108 = vector.broadcast %98 : vector<16x1xf32> to vector<16x32xf32>
    %109 = arith.subf %94, %108 : vector<16x32xf32>
    %cst_45 = arith.constant 9.99999974E-6 : f32
    %110 = vector.broadcast %cst_45 : f32 to vector<16x1xf32>
    %111 = arith.addf %107, %110 : vector<16x1xf32>
    %112 = math.rsqrt %111 : vector<16x1xf32>
    %113 = vector.broadcast %112 : vector<16x1xf32> to vector<16x32xf32>
    %114 = arith.mulf %109, %113 : vector<16x32xf32>
    %c5 = arith.constant 5 : index
    %c0_46 = arith.constant 0 : index
    %115 = vector.load %arg4[%c5, %c0_46] : memref<136x64xf32, #tpu.memory_space<vmem>>, vector<1x32xf32>
    %116 = vector.broadcast %115 : vector<1x32xf32> to vector<16x32xf32>
    %117 = arith.mulf %114, %116 : vector<16x32xf32>
    %c6 = arith.constant 6 : index
    %c0_47 = arith.constant 0 : index
    %118 = vector.load %arg4[%c6, %c0_47] : memref<136x64xf32, #tpu.memory_space<vmem>>, vector<1x32xf32>
    %119 = vector.broadcast %118 : vector<1x32xf32> to vector<16x32xf32>
    %120 = arith.addf %117, %119 : vector<16x32xf32>
    %c0_48 = arith.constant 0 : index
    %c0_49 = arith.constant 0 : index
    %121 = vector.load %arg5[%c0_48, %c0_49] : memref<16x32xf32, #tpu.memory_space<vmem>>, vector<16x32xf32>
    tpu.vector_store %arg5[%c0_48, %c0_49], %120 {strides = array<i32>} : memref<16x32xf32, #tpu.memory_space<vmem>>, vector<16x32xf32>,
    return
  }
  func.func @transform_0(%arg0: i32) -> (i32, i32, i32, i32) {
    %c0_i32 = arith.constant 0 : i32
    %c0_i32_0 = arith.constant 0 : i32
    %c0_i32_1 = arith.constant 0 : i32
    %c0_i32_2 = arith.constant 0 : i32
    %c0_i32_3 = arith.constant 0 : i32
    return %c0_i32, %c0_i32_0, %c0_i32_1, %c0_i32_2 : i32, i32, i32, i32
  }
  func.func @transform_1(%arg0: i32) -> (i32, i32, i32) {
    %c0_i32 = arith.constant 0 : i32
    %c0_i32_0 = arith.constant 0 : i32
    %c0_i32_1 = arith.constant 0 : i32
    %c0_i32_2 = arith.constant 0 : i32
    return %c0_i32, %c0_i32_0, %c0_i32_1 : i32, i32, i32
  }
  func.func @transform_2(%arg0: i32) -> (i32, i32) {
    %c0_i32 = arith.constant 0 : i32
    %c0_i32_0 = arith.constant 0 : i32
    %c0_i32_1 = arith.constant 0 : i32
    return %c0_i32, %c0_i32_0 : i32, i32
  }
  func.func @transform_3(%arg0: i32) -> (i32, i32) {
    %c0_i32 = arith.constant 0 : i32
    %c0_i32_0 = arith.constant 0 : i32
    %c0_i32_1 = arith.constant 0 : i32
    return %c0_i32, %c0_i32_0 : i32, i32
  }
  func.func @transform_4(%arg0: i32) -> (i32, i32) {
    %c0_i32 = arith.constant 0 : i32
    %c0_i32_0 = arith.constant 0 : i32
    %c0_i32_1 = arith.constant 0 : i32
    return %c0_i32, %c0_i32_0 : i32, i32
  }
}

</mosaic_0001>

<llo_original>
// kernel: transformer_encoder_block.1
$region0: #{transformer_encoder_block.1}
  #allocation0 [shape = 'u32[]', space=smem, size = 0x4, offset = 0x4, fixed_abs, tag = 'smem constant byte address 0x4 - core index']
  #allocation1 [shape = 'u32[144,128]{1,0:T(1,128)}', space=vmem, size = 0x12000, scoped, tag = 'internal scratch']
  %s0 = inlined_call_operand.vmem [shape: f32[2,8,8,8], index: 0, kind: input, shape index: {}]
  %s1 = inlined_call_operand.vmem [shape: f32[8,8,8], index: 1, kind: input, shape index: {}]
  %s2 = inlined_call_operand.vmem [shape: f32[16,32], index: 2, kind: input, shape index: {}]
  %s3 = inlined_call_operand.vmem [shape: f32[136,64], index: 3, kind: input, shape index: {}]
  %s4 = inlined_call_operand.hbm [shape: f32[16,32], index: 4, kind: output, shape index: {}]
  %s5 = sld [smem:[#allocation0]]
  $region26: #{transformer_encoder_block.1} parent=0
    _
  %s7 = ssub.s32 1, %s5
  %s8 = scalar_select 0, %s7, %s5
  $region1: #{transformer_encoder_block.1} parent=0
    #allocation2 [shape = 'u8[8192]{0}', space=vmem, size = 0x2000, scoped, tag = 'output window, operand 0, single buffered']
    #allocation3 [shape = 's32[1]{0}', space=sflag, size = 0x4, scoped, tag = 'scoped memory for transformer_encoder_block.1']
    %9 = vsyncpa [#allocation3], 0
    // Predicated region
    $region2: #{transformer_encoder_block.1} parent=1 // pred_check
      _
    $region3: #{transformer_encoder_block.1} parent=1 // pred_check_branch
      %11 = sbr.rel (0) target = $region5
    $region4: #{transformer_encoder_block.1} parent=1 // pred_region
      _
    $region5: #{transformer_encoder_block.1} parent=1 // pred_fallthru
      _
    // Predicated region
    $region6: #{transformer_encoder_block.1} parent=1 // pred_check
      _
    $region7: #{transformer_encoder_block.1} parent=1 // pred_check_branch
      %13 = sbr.rel (0) target = $region9
    $region8: #{transformer_encoder_block.1} parent=1 // pred_region
      _
    $region9: #{transformer_encoder_block.1} parent=1 // pred_fallthru
      _
    // Predicated region
    $region10: #{transformer_encoder_block.1} parent=1 // pred_check
      _
    $region11: #{transformer_encoder_block.1} parent=1 // pred_check_branch
      %15 = sbr.rel (0) target = $region13
    $region12: #{transformer_encoder_block.1} parent=1 // pred_region
      _
    $region13: #{transformer_encoder_block.1} parent=1 // pred_fallthru
      _
    // Predicated region
    $region14: #{transformer_encoder_block.1} parent=1 // pred_check
      _
    $region15: #{transformer_encoder_block.1} parent=1 // pred_check_branch
      %17 = sbr.rel (0) target = $region17
    $region16: #{transformer_encoder_block.1} parent=1 // pred_region
      _
    $region17: #{transformer_encoder_block.1} parent=1 // pred_fallthru
      _
    %v18 = vld [vmem:[%s0] sm:$0xff]
    %v19 = vld [vmem:[%s0 + $0x8] sm:$0xff]
    %v20 = vld [vmem:[%s0 + $0x10] sm:$0xff]
    %v21 = vld [vmem:[%s0 + $0x18] sm:$0xff]
    %v22 = vld [vmem:[%s0 + $0x20] sm:$0xff]
    %v23 = vld [vmem:[%s0 + $0x28] sm:$0xff]
    %v24 = vld [vmem:[%s0 + $0x30] sm:$0xff]
    %v25 = vld [vmem:[%s0 + $0x38] sm:$0xff]
    %s26 = scalar_lea.vmem %s0, 64
    %v27 = vld [vmem:[%s26] sm:$0xff]
    %v28 = vld [vmem:[%s26 + $0x8] sm:$0xff]
    %v29 = vld [vmem:[%s26 + $0x10] sm:$0xff]
    %v30 = vld [vmem:[%s26 + $0x18] sm:$0xff]
    %v31 = vld [vmem:[%s26 + $0x20] sm:$0xff]
    %v32 = vld [vmem:[%s26 + $0x28] sm:$0xff]
    %v33 = vld [vmem:[%s26 + $0x30] sm:$0xff]
    %v34 = vld [vmem:[%s26 + $0x38] sm:$0xff]
    %v35 = vld [vmem:[%s1] sm:$0xff]
    %v36 = vld [vmem:[%s1 + $0x8] sm:$0xff]
    %v37 = vld [vmem:[%s1 + $0x10] sm:$0xff]
    %v38 = vld [vmem:[%s1 + $0x18] sm:$0xff]
    %v39 = vld [vmem:[%s1 + $0x20] sm:$0xff]
    %v40 = vld [vmem:[%s1 + $0x28] sm:$0xff]
    %v41 = vld [vmem:[%s1 + $0x30] sm:$0xff]
    %v42 = vld [vmem:[%s1 + $0x38] sm:$0xff]
    %vm43 = vcmask 64512
    %v45 = vsel %vm43, %v18, 0
    %47 = vmatprep.subr.mxu0 0.0
    %48 = vmatpush1.msra.mxu0 %v35
    %49 = vmatprep.subr.mxu0 0.0
    %50 = vmatpush1.msra.mxu0 0.0
    %51 = vmatprep.subr.mxu0 0.0
    %52 = vmatpush1.msra.mxu0 0.0
    %53 = vmatprep.subr.mxu0 0.0
    %54 = vmatpush1.msra.mxu0 0.0
    %55 = vmatprep.subr.mxu0 0.0
    %56 = vmatpush1.msra.mxu0 0.0
    %57 = vmatprep.subr.mxu0 0.0
    %58 = vmatpush1.msra.mxu0 0.0
    %59 = vmatprep.subr.mxu0 0.0
    %60 = vmatpush1.msra.mxu0 0.0
    %61 = vmatprep.subr.mxu0 0.0
    %62 = vmatpush1.msra.mxu0 0.0
    %63 = vmatprep.subr.mxu0 0.0
    %64 = vmatpush1.msra.mxu0 0.0
    %65 = vmatprep.subr.mxu0 0.0
    %66 = vmatpush1.msra.mxu0 0.0
    %67 = vmatprep.subr.mxu0 0.0
    %68 = vmatpush1.msra.mxu0 0.0
    %69 = vmatprep.subr.mxu0 0.0
    %70 = vmatpush1.msra.mxu0 0.0
    %71 = vmatprep.subr.mxu0 0.0
    %72 = vmatpush1.msra.mxu0 0.0
    %73 = vmatprep.subr.mxu0 0.0
    %74 = vmatpush1.msra.mxu0 0.0
    %75 = vmatprep.subr.mxu0 0.0
    %76 = vmatpush1.msra.mxu0 0.0
    %77 = vmatprep.subr.mxu0 0.0
    %78 = vmatpush1.msra.mxu0 0.0
    %79 = vmatprep.subr.mxu0 0.0
    %80 = vmatpush1.msra.mxu0 0.0
    %81 = vmatprep.subr.mxu0 0.0
    %82 = vmatpush1.msra.mxu0 0.0
    %83 = vmatprep.subr.mxu0 0.0
    %84 = vmatpush1.msra.mxu0 0.0
    %85 = vmatprep.subr.mxu0 0.0
    %86 = vmatpush1.msra.mxu0 0.0
    %87 = vmatprep.subr.mxu0 0.0
    %88 = vmatpush1.msra.mxu0 0.0
    %89 = vmatprep.subr.mxu0 0.0
    %90 = vmatpush1.msra.mxu0 0.0
    %91 = vmatprep.subr.mxu0 0.0
    %92 = vmatpush1.msra.mxu0 0.0
    %93 = vmatprep.subr.mxu0 0.0
    %94 = vmatpush1.msra.mxu0 0.0
    %95 = vmatprep.subr.mxu0 0.0
    %96 = vmatpush1.msra.mxu0 0.0
    %97 = vmatprep.subr.mxu0 0.0
    %98 = vmatpush1.msra.mxu0 0.0
    %99 = vmatprep.subr.mxu0 0.0
    %100 = vmatpush1.msra.mxu0 0.0
    %101 = vmatprep.subr.mxu0 0.0
    %102 = vmatpush1.msra.mxu0 0.0
    %103 = vmatprep.subr.mxu0 0.0
    %104 = vmatpush1.msra.mxu0 0.0
    %105 = vmatprep.subr.mxu0 0.0
    %106 = vmatpush1.msra.mxu0 0.0
    %107 = vmatprep.subr.mxu0 0.0
    %108 = vmatpush1.msra.mxu0 0.0
    %109 = vmatprep.subr.mxu0 0.0
    %110 = vmatpush1.msra.mxu0 0.0
    %111 = vmatprep.mubr.f32.mxu0 0.0
    %112 = vmatmul.mubr.f32.gmra.mrb[0].mxu0 %v45
    %v113 = vpop.f32.mrb[0].mxu0
    %v114 = vadd.f32 0.0, %v113
    %v115 = vpop.f32.mrb[0].mxu0
    %116 = vdwg.mxu0
    %v118 = vsel %vm43, %v19, 0
    %120 = vmatprep.subr.mxu0 0.0
    %121 = vmatpush1.msra.mxu0 %v36
    %122 = vmatprep.subr.mxu0 0.0
    %123 = vmatpush1.msra.mxu0 0.0
    %124 = vmatprep.subr.mxu0 0.0
    %125 = vmatpush1.msra.mxu0 0.0
    %126 = vmatprep.subr.mxu0 0.0
    %127 = vmatpush1.msra.mxu0 0.0
    %128 = vmatprep.subr.mxu0 0.0
    %129 = vmatpush1.msra.mxu0 0.0
    %130 = vmatprep.subr.mxu0 0.0
    %131 = vmatpush1.msra.mxu0 0.0
    %132 = vmatprep.subr.mxu0 0.0
    %133 = vmatpush1.msra.mxu0 0.0
    %134 = vmatprep.subr.mxu0 0.0
    %135 = vmatpush1.msra.mxu0 0.0
    %136 = vmatprep.subr.mxu0 0.0
    %137 = vmatpush1.msra.mxu0 0.0
    %138 = vmatprep.subr.mxu0 0.0
    %139 = vmatpush1.msra.mxu0 0.0
    %140 = vmatprep.subr.mxu0 0.0
    %141 = vmatpush1.msra.mxu0 0.0
    %142 = vmatprep.subr.mxu0 0.0
    %143 = vmatpush1.msra.mxu0 0.0
    %144 = vmatprep.subr.mxu0 0.0
    %145 = vmatpush1.msra.mxu0 0.0
    %146 = vmatprep.subr.mxu0 0.0
    %147 = vmatpush1.msra.mxu0 0.0
    %148 = vmatprep.subr.mxu0 0.0
    %149 = vmatpush1.msra.mxu0 0.0
    %150 = vmatprep.subr.mxu0 0.0
    %151 = vmatpush1.msra.mxu0 0.0
    %152 = vmatprep.subr.mxu0 0.0
    %153 = vmatpush1.msra.mxu0 0.0
    %154 = vmatprep.subr.mxu0 0.0
    %155 = vmatpush1.msra.mxu0 0.0
    %156 = vmatprep.subr.mxu0 0.0
    %157 = vmatpush1.msra.mxu0 0.0
    %158 = vmatprep.subr.mxu0 0.0
    %159 = vmatpush1.msra.mxu0 0.0
    %160 = vmatprep.subr.mxu0 0.0
    %161 = vmatpush1.msra.mxu0 0.0
    %162 = vmatprep.subr.mxu0 0.0
    %163 = vmatpush1.msra.mxu0 0.0
    %164 = vmatprep.subr.mxu0 0.0
    %165 = vmatpush1.msra.mxu0 0.0
    %166 = vmatprep.subr.mxu0 0.0
    %167 = vmatpush1.msra.mxu0 0.0
    %168 = vmatprep.subr.mxu0 0.0
    %169 = vmatpush1.msra.mxu0 0.0
    %170 = vmatprep.subr.mxu0 0.0
    %171 = vmatpush1.msra.mxu0 0.0
    %172 = vmatprep.subr.mxu0 0.0
    %173 = vmatpush1.msra.mxu0 0.0
    %174 = vmatprep.subr.mxu0 0.0
    %175 = vmatpush1.msra.mxu0 0.0
    %176 = vmatprep.subr.mxu0 0.0
    %177 = vmatpush1.msra.mxu0 0.0
    %178 = vmatprep.subr.mxu0 0.0
    %179 = vmatpush1.msra.mxu0 0.0
    %180 = vmatprep.subr.mxu0 0.0
    %181 = vmatpush1.msra.mxu0 0.0
    %182 = vmatprep.subr.mxu0 0.0
    %183 = vmatpush1.msra.mxu0 0.0
    %184 = vmatprep.mubr.f32.mxu0 0.0
    %185 = vmatmul.mubr.f32.gmra.mrb[0].mxu0 %v118
    %v186 = vpop.f32.mrb[0].mxu0
    %v187 = vadd.f32 0.0, %v186
    %v188 = vpop.f32.mrb[0].mxu0
    %189 = vdwg.mxu0
    %v191 = vsel %vm43, %v20, 0
    %193 = vmatprep.subr.mxu0 0.0
    %194 = vmatpush1.msra.mxu0 %v37
    %195 = vmatprep.subr.mxu0 0.0
    %196 = vmatpush1.msra.mxu0 0.0
    %197 = vmatprep.subr.mxu0 0.0
    %198 = vmatpush1.msra.mxu0 0.0
    %199 = vmatprep.subr.mxu0 0.0
    %200 = vmatpush1.msra.mxu0 0.0
    %201 = vmatprep.subr.mxu0 0.0
    %202 = vmatpush1.msra.mxu0 0.0
    %203 = vmatprep.subr.mxu0 0.0
    %204 = vmatpush1.msra.mxu0 0.0
    %205 = vmatprep.subr.mxu0 0.0
    %206 = vmatpush1.msra.mxu0 0.0
    %207 = vmatprep.subr.mxu0 0.0
    %208 = vmatpush1.msra.mxu0 0.0
    %209 = vmatprep.subr.mxu0 0.0
    %210 = vmatpush1.msra.mxu0 0.0
    %211 = vmatprep.subr.mxu0 0.0
    %212 = vmatpush1.msra.mxu0 0.0
    %213 = vmatprep.subr.mxu0 0.0
    %214 = vmatpush1.msra.mxu0 0.0
    %215 = vmatprep.subr.mxu0 0.0
    %216 = vmatpush1.msra.mxu0 0.0
    %217 = vmatprep.subr.mxu0 0.0
    %218 = vmatpush1.msra.mxu0 0.0
    %219 = vmatprep.subr.mxu0 0.0
    %220 = vmatpush1.msra.mxu0 0.0
    %221 = vmatprep.subr.mxu0 0.0
    %222 = vmatpush1.msra.mxu0 0.0
    %223 = vmatprep.subr.mxu0 0.0
    %224 = vmatpush1.msra.mxu0 0.0
    %225 = vmatprep.subr.mxu0 0.0
    %226 = vmatpush1.msra.mxu0 0.0
    %227 = vmatprep.subr.mxu0 0.0
    %228 = vmatpush1.msra.mxu0 0.0
    %229 = vmatprep.subr.mxu0 0.0
    %230 = vmatpush1.msra.mxu0 0.0
    %231 = vmatprep.subr.mxu0 0.0
    %232 = vmatpush1.msra.mxu0 0.0
    %233 = vmatprep.subr.mxu0 0.0
    %234 = vmatpush1.msra.mxu0 0.0
    %235 = vmatprep.subr.mxu0 0.0
    %236 = vmatpush1.msra.mxu0 0.0
    %237 = vmatprep.subr.mxu0 0.0
    %238 = vmatpush1.msra.mxu0 0.0
    %239 = vmatprep.subr.mxu0 0.0
    %240 = vmatpush1.msra.mxu0 0.0
    %241 = vmatprep.subr.mxu0 0.0
    %242 = vmatpush1.msra.mxu0 0.0
    %243 = vmatprep.subr.mxu0 0.0
    %244 = vmatpush1.msra.mxu0 0.0
    %245 = vmatprep.subr.mxu0 0.0
    %246 = vmatpush1.msra.mxu0 0.0
    %247 = vmatprep.subr.mxu0 0.0
    %248 = vmatpush1.msra.mxu0 0.0
    %249 = vmatprep.subr.mxu0 0.0
    %250 = vmatpush1.msra.mxu0 0.0
    %251 = vmatprep.subr.mxu0 0.0
    %252 = vmatpush1.msra.mxu0 0.0
    %253 = vmatprep.subr.mxu0 0.0
    %254 = vmatpush1.msra.mxu0 0.0
    %255 = vmatprep.subr.mxu0 0.0
    %256 = vmatpush1.msra.mxu0 0.0
    %257 = vmatprep.mubr.f32.mxu0 0.0
    %258 = vmatmul.mubr.f32.gmra.mrb[0].mxu0 %v191
    %v259 = vpop.f32.mrb[0].mxu0
    %v260 = vadd.f32 0.0, %v259
    %v261 = vpop.f32.mrb[0].mxu0
    %262 = vdwg.mxu0
    %v264 = vsel %vm43, %v21, 0
    %266 = vmatprep.subr.mxu0 0.0
    %267 = vmatpush1.msra.mxu0 %v38
    %268 = vmatprep.subr.mxu0 0.0
    %269 = vmatpush1.msra.mxu0 0.0
    %270 = vmatprep.subr.mxu0 0.0
    %271 = vmatpush1.msra.mxu0 0.0
    %272 = vmatprep.subr.mxu0 0.0
    %273 = vmatpush1.msra.mxu0 0.0
    %274 = vmatprep.subr.mxu0 0.0
    %275 = vmatpush1.msra.mxu0 0.0
    %276 = vmatprep.subr.mxu0 0.0
    %277 = vmatpush1.msra.mxu0 0.0
    %278 = vmatprep.subr.mxu0 0.0
    %279 = vmatpush1.msra.mxu0 0.0
    %280 = vmatprep.subr.mxu0 0.0
    %281 = vmatpush1.msra.mxu0 0.0
    %282 = vmatprep.subr.mxu0 0.0
    %283 = vmatpush1.msra.mxu0 0.0
    %284 = vmatprep.subr.mxu0 0.0
    %285 = vmatpush1.msra.mxu0 0.0
    %286 = vmatprep.subr.mxu0 0.0
    %287 = vmatpush1.msra.mxu0 0.0
    %288 = vmatprep.subr.mxu0 0.0
    %289 = vmatpush1.msra.mxu0 0.0
    %290 = vmatprep.subr.mxu0 0.0
    %291 = vmatpush1.msra.mxu0 0.0
    %292 = vmatprep.subr.mxu0 0.0
    %293 = vmatpush1.msra.mxu0 0.0
    %294 = vmatprep.subr.mxu0 0.0
    %295 = vmatpush1.msra.mxu0 0.0
    %296 = vmatprep.subr.mxu0 0.0
    %297 = vmatpush1.msra.mxu0 0.0
    %298 = vmatprep.subr.mxu0 0.0
    %299 = vmatpush1.msra.mxu0 0.0
    %300 = vmatprep.subr.mxu0 0.0
    %301 = vmatpush1.msra.mxu0 0.0
    %302 = vmatprep.subr.mxu0 0.0
    %303 = vmatpush1.msra.mxu0 0.0
    %304 = vmatprep.subr.mxu0 0.0
    %305 = vmatpush1.msra.mxu0 0.0
    %306 = vmatprep.subr.mxu0 0.0
    %307 = vmatpush1.msra.mxu0 0.0
    %308 = vmatprep.subr.mxu0 0.0
    %309 = vmatpush1.msra.mxu0 0.0
    %310 = vmatprep.subr.mxu0 0.0
    %311 = vmatpush1.msra.mxu0 0.0
    %312 = vmatprep.subr.mxu0 0.0
    %313 = vmatpush1.msra.mxu0 0.0
    %314 = vmatprep.subr.mxu0 0.0
    %315 = vmatpush1.msra.mxu0 0.0
    %316 = vmatprep.subr.mxu0 0.0
    %317 = vmatpush1.msra.mxu0 0.0
    %318 = vmatprep.subr.mxu0 0.0
    %319 = vmatpush1.msra.mxu0 0.0
    %320 = vmatprep.subr.mxu0 0.0
    %321 = vmatpush1.msra.mxu0 0.0
    %322 = vmatprep.subr.mxu0 0.0
    %323 = vmatpush1.msra.mxu0 0.0
    %324 = vmatprep.subr.mxu0 0.0
    %325 = vmatpush1.msra.mxu0 0.0
    %326 = vmatprep.subr.mxu0 0.0
    %327 = vmatpush1.msra.mxu0 0.0
    %328 = vmatprep.subr.mxu0 0.0
    %329 = vmatpush1.msra.mxu0 0.0
    %330 = vmatprep.mubr.f32.mxu0 0.0
    %331 = vmatmul.mubr.f32.gmra.mrb[0].mxu0 %v264
    %v332 = vpop.f32.mrb[0].mxu0
    %v333 = vadd.f32 0.0, %v332
    %v334 = vpop.f32.mrb[0].mxu0
    %335 = vdwg.mxu0
    %v337 = vsel %vm43, %v22, 0
    %339 = vmatprep.subr.mxu0 0.0
    %340 = vmatpush1.msra.mxu0 %v39
    %341 = vmatprep.subr.mxu0 0.0
    %342 = vmatpush1.msra.mxu0 0.0
    %343 = vmatprep.subr.mxu0 0.0
    %344 = vmatpush1.msra.mxu0 0.0
    %345 = vmatprep.subr.mxu0 0.0
    %346 = vmatpush1.msra.mxu0 0.0
    %347 = vmatprep.subr.mxu0 0.0
    %348 = vmatpush1.msra.mxu0 0.0
    %349 = vmatprep.subr.mxu0 0.0
    %350 = vmatpush1.msra.mxu0 0.0
    %351 = vmatprep.subr.mxu0 0.0
    %352 = vmatpush1.msra.mxu0 0.0
    %353 = vmatprep.subr.mxu0 0.0
    %354 = vmatpush1.msra.mxu0 0.0
    %355 = vmatprep.subr.mxu0 0.0
    %356 = vmatpush1.msra.mxu0 0.0
    %357 = vmatprep.subr.mxu0 0.0
    %358 = vmatpush1.msra.mxu0 0.0
    %359 = vmatprep.subr.mxu0 0.0
    %360 = vmatpush1.msra.mxu0 0.0
    %361 = vmatprep.subr.mxu0 0.0
    %362 = vmatpush1.msra.mxu0 0.0
    %363 = vmatprep.subr.mxu0 0.0
    %364 = vmatpush1.msra.mxu0 0.0
    %365 = vmatprep.subr.mxu0 0.0
    %366 = vmatpush1.msra.mxu0 0.0
    %367 = vmatprep.subr.mxu0 0.0
    %368 = vmatpush1.msra.mxu0 0.0
    %369 = vmatprep.subr.mxu0 0.0
    %370 = vmatpush1.msra.mxu0 0.0
    %371 = vmatprep.subr.mxu0 0.0
    %372 = vmatpush1.msra.mxu0 0.0
    %373 = vmatprep.subr.mxu0 0.0
    %374 = vmatpush1.msra.mxu0 0.0
    %375 = vmatprep.subr.mxu0 0.0
    %376 = vmatpush1.msra.mxu0 0.0
    %377 = vmatprep.subr.mxu0 0.0
    %378 = vmatpush1.msra.mxu0 0.0
    %379 = vmatprep.subr.mxu0 0.0
    %380 = vmatpush1.msra.mxu0 0.0
    %381 = vmatprep.subr.mxu0 0.0
    %382 = vmatpush1.msra.mxu0 0.0
    %383 = vmatprep.subr.mxu0 0.0
    %384 = vmatpush1.msra.mxu0 0.0
    %385 = vmatprep.subr.mxu0 0.0
    %386 = vmatpush1.msra.mxu0 0.0
    %387 = vmatprep.subr.mxu0 0.0
    %388 = vmatpush1.msra.mxu0 0.0
    %389 = vmatprep.subr.mxu0 0.0
    %390 = vmatpush1.msra.mxu0 0.0
    %391 = vmatprep.subr.mxu0 0.0
    %392 = vmatpush1.msra.mxu0 0.0
    %393 = vmatprep.subr.mxu0 0.0
    %394 = vmatpush1.msra.mxu0 0.0
    %395 = vmatprep.subr.mxu0 0.0
    %396 = vmatpush1.msra.mxu0 0.0
    %397 = vmatprep.subr.mxu0 0.0
    %398 = vmatpush1.msra.mxu0 0.0
    %399 = vmatprep.subr.mxu0 0.0
    %400 = vmatpush1.msra.mxu0 0.0
    %401 = vmatprep.subr.mxu0 0.0
    %402 = vmatpush1.msra.mxu0 0.0
    %403 = vmatprep.mubr.f32.mxu0 0.0
    %404 = vmatmul.mubr.f32.gmra.mrb[0].mxu0 %v337
    %v405 = vpop.f32.mrb[0].mxu0
    %v406 = vadd.f32 0.0, %v405
    %v407 = vpop.f32.mrb[0].mxu0
    %408 = vdwg.mxu0
    %v410 = vsel %vm43, %v23, 0
    %412 = vmatprep.subr.mxu0 0.0
    %413 = vmatpush1.msra.mxu0 %v40
    %414 = vmatprep.subr.mxu0 0.0
    %415 = vmatpush1.msra.mxu0 0.0
    %416 = vmatprep.subr.mxu0 0.0
    %417 = vmatpush1.msra.mxu0 0.0
    %418 = vmatprep.subr.mxu0 0.0
    %419 = vmatpush1.msra.mxu0 0.0
    %420 = vmatprep.subr.mxu0 0.0
    %421 = vmatpush1.msra.mxu0 0.0
    %422 = vmatprep.subr.mxu0 0.0
    %423 = vmatpush1.msra.mxu0 0.0
    %424 = vmatprep.subr.mxu0 0.0
    %425 = vmatpush1.msra.mxu0 0.0
    %426 = vmatprep.subr.mxu0 0.0
    %427 = vmatpush1.msra.mxu0 0.0
    %428 = vmatprep.subr.mxu0 0.0
    %429 = vmatpush1.msra.mxu0 0.0
    %430 = vmatprep.subr.mxu0 0.0
    %431 = vmatpush1.msra.mxu0 0.0
    %432 = vmatprep.subr.mxu0 0.0
    %433 = vmatpush1.msra.mxu0 0.0
    %434 = vmatprep.subr.mxu0 0.0
    %435 = vmatpush1.msra.mxu0 0.0
    %436 = vmatprep.subr.mxu0 0.0
    %437 = vmatpush1.msra.mxu0 0.0
    %438 = vmatprep.subr.mxu0 0.0
    %439 = vmatpush1.msra.mxu0 0.0
    %440 = vmatprep.subr.mxu0 0.0
    %441 = vmatpush1.msra.mxu0 0.0
    %442 = vmatprep.subr.mxu0 0.0
    %443 = vmatpush1.msra.mxu0 0.0
    %444 = vmatprep.subr.mxu0 0.0
    %445 = vmatpush1.msra.mxu0 0.0
    %446 = vmatprep.subr.mxu0 0.0
    %447 = vmatpush1.msra.mxu0 0.0
    %448 = vmatprep.subr.mxu0 0.0
    %449 = vmatpush1.msra.mxu0 0.0
    %450 = vmatprep.subr.mxu0 0.0
    %451 = vmatpush1.msra.mxu0 0.0
    %452 = vmatprep.subr.mxu0 0.0
    %453 = vmatpush1.msra.mxu0 0.0
    %454 = vmatprep.subr.mxu0 0.0
    %455 = vmatpush1.msra.mxu0 0.0
    %456 = vmatprep.subr.mxu0 0.0
    %457 = vmatpush1.msra.mxu0 0.0
    %458 = vmatprep.subr.mxu0 0.0
    %459 = vmatpush1.msra.mxu0 0.0
    %460 = vmatprep.subr.mxu0 0.0
    %461 = vmatpush1.msra.mxu0 0.0
    %462 = vmatprep.subr.mxu0 0.0
    %463 = vmatpush1.msra.mxu0 0.0
    %464 = vmatprep.subr.mxu0 0.0
    %465 = vmatpush1.msra.mxu0 0.0
    %466 = vmatprep.subr.mxu0 0.0
    %467 = vmatpush1.msra.mxu0 0.0
    %468 = vmatprep.subr.mxu0 0.0
    %469 = vmatpush1.msra.mxu0 0.0
    %470 = vmatprep.subr.mxu0 0.0
    %471 = vmatpush1.msra.mxu0 0.0
    %472 = vmatprep.subr.mxu0 0.0
    %473 = vmatpush1.msra.mxu0 0.0
    %474 = vmatprep.subr.mxu0 0.0
    %475 = vmatpush1.msra.mxu0 0.0
    %476 = vmatprep.mubr.f32.mxu0 0.0
    %477 = vmatmul.mubr.f32.gmra.mrb[0].mxu0 %v410
    %v478 = vpop.f32.mrb[0].mxu0
    %v479 = vadd.f32 0.0, %v478
    %v480 = vpop.f32.mrb[0].mxu0
    %481 = vdwg.mxu0
    %v483 = vsel %vm43, %v24, 0
    %485 = vmatprep.subr.mxu0 0.0
    %486 = vmatpush1.msra.mxu0 %v41
    %487 = vmatprep.subr.mxu0 0.0
    %488 = vmatpush1.msra.mxu0 0.0
    %489 = vmatprep.subr.mxu0 0.0
    %490 = vmatpush1.msra.mxu0 0.0
    %491 = vmatprep.subr.mxu0 0.0
    %492 = vmatpush1.msra.mxu0 0.0
    %493 = vmatprep.subr.mxu0 0.0
    %494 = vmatpush1.msra.mxu0 0.0
    %495 = vmatprep.subr.mxu0 0.0
    %496 = vmatpush1.msra.mxu0 0.0
    %497 = vmatprep.subr.mxu0 0.0
    %498 = vmatpush1.msra.mxu0 0.0
    %499 = vmatprep.subr.mxu0 0.0
    %500 = vmatpush1.msra.mxu0 0.0
    %501 = vmatprep.subr.mxu0 0.0
    %502 = vmatpush1.msra.mxu0 0.0
    %503 = vmatprep.subr.mxu0 0.0
    %504 = vmatpush1.msra.mxu0 0.0
    %505 = vmatprep.subr.mxu0 0.0
    %506 = vmatpush1.msra.mxu0 0.0
    %507 = vmatprep.subr.mxu0 0.0
    %508 = vmatpush1.msra.mxu0 0.0
    %509 = vmatprep.subr.mxu0 0.0
    %510 = vmatpush1.msra.mxu0 0.0
    %511 = vmatprep.subr.mxu0 0.0
    %512 = vmatpush1.msra.mxu0 0.0
    %513 = vmatprep.subr.mxu0 0.0
    %514 = vmatpush1.msra.mxu0 0.0
    %515 = vmatprep.subr.mxu0 0.0
    %516 = vmatpush1.msra.mxu0 0.0
    %517 = vmatprep.subr.mxu0 0.0
    %518 = vmatpush1.msra.mxu0 0.0
    %519 = vmatprep.subr.mxu0 0.0
    %520 = vmatpush1.msra.mxu0 0.0
    %521 = vmatprep.subr.mxu0 0.0
    %522 = vmatpush1.msra.mxu0 0.0
    %523 = vmatprep.subr.mxu0 0.0
    %524 = vmatpush1.msra.mxu0 0.0
    %525 = vmatprep.subr.mxu0 0.0
    %526 = vmatpush1.msra.mxu0 0.0
    %527 = vmatprep.subr.mxu0 0.0
    %528 = vmatpush1.msra.mxu0 0.0
    %529 = vmatprep.subr.mxu0 0.0
    %530 = vmatpush1.msra.mxu0 0.0
    %531 = vmatprep.subr.mxu0 0.0
    %532 = vmatpush1.msra.mxu0 0.0
    %533 = vmatprep.subr.mxu0 0.0
    %534 = vmatpush1.msra.mxu0 0.0
    %535 = vmatprep.subr.mxu0 0.0
    %536 = vmatpush1.msra.mxu0 0.0
    %537 = vmatprep.subr.mxu0 0.0
    %538 = vmatpush1.msra.mxu0 0.0
    %539 = vmatprep.subr.mxu0 0.0
    %540 = vmatpush1.msra.mxu0 0.0
    %541 = vmatprep.subr.mxu0 0.0
    %542 = vmatpush1.msra.mxu0 0.0
    %543 = vmatprep.subr.mxu0 0.0
    %544 = vmatpush1.msra.mxu0 0.0
    %545 = vmatprep.subr.mxu0 0.0
    %546 = vmatpush1.msra.mxu0 0.0
    %547 = vmatprep.subr.mxu0 0.0
    %548 = vmatpush1.msra.mxu0 0.0
    %549 = vmatprep.mubr.f32.mxu0 0.0
    %550 = vmatmul.mubr.f32.gmra.mrb[0].mxu0 %v483
    %v551 = vpop.f32.mrb[0].mxu0
    %v552 = vadd.f32 0.0, %v551
    %v553 = vpop.f32.mrb[0].mxu0
    %554 = vdwg.mxu0
    %v556 = vsel %vm43, %v25, 0
    %558 = vmatprep.subr.mxu0 0.0
    %559 = vmatpush1.msra.mxu0 %v42
    %560 = vmatprep.subr.mxu0 0.0
    %561 = vmatpush1.msra.mxu0 0.0
    %562 = vmatprep.subr.mxu0 0.0
    %563 = vmatpush1.msra.mxu0 0.0
    %564 = vmatprep.subr.mxu0 0.0
    %565 = vmatpush1.msra.mxu0 0.0
    %566 = vmatprep.subr.mxu0 0.0
    %567 = vmatpush1.msra.mxu0 0.0
    %568 = vmatprep.subr.mxu0 0.0
    %569 = vmatpush1.msra.mxu0 0.0
    %570 = vmatprep.subr.mxu0 0.0
    %571 = vmatpush1.msra.mxu0 0.0
    %572 = vmatprep.subr.mxu0 0.0
    %573 = vmatpush1.msra.mxu0 0.0
    %574 = vmatprep.subr.mxu0 0.0
    %575 = vmatpush1.msra.mxu0 0.0
    %576 = vmatprep.subr.mxu0 0.0
    %577 = vmatpush1.msra.mxu0 0.0
    %578 = vmatprep.subr.mxu0 0.0
    %579 = vmatpush1.msra.mxu0 0.0
    %580 = vmatprep.subr.mxu0 0.0
    %581 = vmatpush1.msra.mxu0 0.0
    %582 = vmatprep.subr.mxu0 0.0
    %583 = vmatpush1.msra.mxu0 0.0
    %584 = vmatprep.subr.mxu0 0.0
    %585 = vmatpush1.msra.mxu0 0.0
    %586 = vmatprep.subr.mxu0 0.0
    %587 = vmatpush1.msra.mxu0 0.0
    %588 = vmatprep.subr.mxu0 0.0
    %589 = vmatpush1.msra.mxu0 0.0
    %590 = vmatprep.subr.mxu0 0.0
    %591 = vmatpush1.msra.mxu0 0.0
    %592 = vmatprep.subr.mxu0 0.0
    %593 = vmatpush1.msra.mxu0 0.0
    %594 = vmatprep.subr.mxu0 0.0
    %595 = vmatpush1.msra.mxu0 0.0
    %596 = vmatprep.subr.mxu0 0.0
    %597 = vmatpush1.msra.mxu0 0.0
    %598 = vmatprep.subr.mxu0 0.0
    %599 = vmatpush1.msra.mxu0 0.0
    %600 = vmatprep.subr.mxu0 0.0
    %601 = vmatpush1.msra.mxu0 0.0
    %602 = vmatprep.subr.mxu0 0.0
    %603 = vmatpush1.msra.mxu0 0.0
    %604 = vmatprep.subr.mxu0 0.0
    %605 = vmatpush1.msra.mxu0 0.0
    %606 = vmatprep.subr.mxu0 0.0
    %607 = vmatpush1.msra.mxu0 0.0
    %608 = vmatprep.subr.mxu0 0.0
    %609 = vmatpush1.msra.mxu0 0.0
    %610 = vmatprep.subr.mxu0 0.0
    %611 = vmatpush1.msra.mxu0 0.0
    %612 = vmatprep.subr.mxu0 0.0
    %613 = vmatpush1.msra.mxu0 0.0
    %614 = vmatprep.subr.mxu0 0.0
    %615 = vmatpush1.msra.mxu0 0.0
    %616 = vmatprep.subr.mxu0 0.0
    %617 = vmatpush1.msra.mxu0 0.0
    %618 = vmatprep.subr.mxu0 0.0
    %619 = vmatpush1.msra.mxu0 0.0
    %620 = vmatprep.subr.mxu0 0.0
    %621 = vmatpush1.msra.mxu0 0.0
    %622 = vmatprep.mubr.f32.mxu0 0.0
    %623 = vmatmul.mubr.f32.gmra.mrb[0].mxu0 %v556
    %v624 = vpop.f32.mrb[0].mxu0
    %v625 = vadd.f32 0.0, %v624
    %v626 = vpop.f32.mrb[0].mxu0
    %627 = vdwg.mxu0
    %v628 = vmul.f32 %v114, 0.35355338
    %v629 = vmul.f32 %v187, 0.35355338
    %v630 = vmul.f32 %v260, 0.35355338
    %v631 = vmul.f32 %v333, 0.35355338
    %v632 = vmul.f32 %v406, 0.35355338
    %v633 = vmul.f32 %v479, 0.35355338
    %v634 = vmul.f32 %v552, 0.35355338
    %v635 = vmul.f32 %v625, 0.35355338
    %v636 = vsel %vm43, %v628, -inf
    %637 = vmax.xlane.f32.xlu0 %v636
    %v638 = vpop.xlane.xlu0 %637
    %v639 = vsel %vm43, %v629, -inf
    %640 = vmax.xlane.f32.xlu0 %v639
    %v641 = vpop.xlane.xlu0 %640
    %v642 = vsel %vm43, %v630, -inf
    %643 = vmax.xlane.f32.xlu0 %v642
    %v644 = vpop.xlane.xlu0 %643
    %v645 = vsel %vm43, %v631, -inf
    %646 = vmax.xlane.f32.xlu0 %v645
    %v647 = vpop.xlane.xlu0 %646
    %v648 = vsel %vm43, %v632, -inf
    %649 = vmax.xlane.f32.xlu0 %v648
    %v650 = vpop.xlane.xlu0 %649
    %v651 = vsel %vm43, %v633, -inf
    %652 = vmax.xlane.f32.xlu0 %v651
    %v653 = vpop.xlane.xlu0 %652
    %v654 = vsel %vm43, %v634, -inf
    %655 = vmax.xlane.f32.xlu0 %v654
    %v656 = vpop.xlane.xlu0 %655
    %v657 = vsel %vm43, %v635, -inf
    %658 = vmax.xlane.f32.xlu0 %v657
    %v659 = vpop.xlane.xlu0 %658
    %v660 = vsub.f32 %v628, %v638
    %v661 = vsub.f32 %v629, %v641
    %v662 = vsub.f32 %v630, %v644
    %v663 = vsub.f32 %v631, %v647
    %v664 = vsub.f32 %v632, %v650
    %v665 = vsub.f32 %v633, %v653
    %v666 = vsub.f32 %v634, %v656
    %v667 = vsub.f32 %v635, %v659
    %v668 = vmul.f32 %v660, 1.442695
    %v669 = vpow.pop %v668
    %v670 = vmul.f32 %v661, 1.442695
    %v671 = vpow.pop %v670
    %v672 = vmul.f32 %v662, 1.442695
    %v673 = vpow.pop %v672
    %v674 = vmul.f32 %v663, 1.442695
    %v675 = vpow.pop %v674
    %v676 = vmul.f32 %v664, 1.442695
    %v677 = vpow.pop %v676
    %v678 = vmul.f32 %v665, 1.442695
    %v679 = vpow.pop %v678
    %v680 = vmul.f32 %v666, 1.442695
    %v681 = vpow.pop %v680
    %v682 = vmul.f32 %v667, 1.442695
    %v683 = vpow.pop %v682
    %v684 = vsel %vm43, %v669, 0.0
    %685 = vadd.xlane.f32.xlu0 %v684
    %v686 = vpop.xlane.xlu0 %685
    %v687 = vsel %vm43, %v671, 0.0
    %688 = vadd.xlane.f32.xlu0 %v687
    %v689 = vpop.xlane.xlu0 %688
    %v690 = vsel %vm43, %v673, 0.0
    %691 = vadd.xlane.f32.xlu0 %v690
    %v692 = vpop.xlane.xlu0 %691
    %v693 = vsel %vm43, %v675, 0.0
    %694 = vadd.xlane.f32.xlu0 %v693
    %v695 = vpop.xlane.xlu0 %694
    %v696 = vsel %vm43, %v677, 0.0
    %697 = vadd.xlane.f32.xlu0 %v696
    %v698 = vpop.xlane.xlu0 %697
    %v699 = vsel %vm43, %v679, 0.0
    %700 = vadd.xlane.f32.xlu0 %v699
    %v701 = vpop.xlane.xlu0 %700
    %v702 = vsel %vm43, %v681, 0.0
    %703 = vadd.xlane.f32.xlu0 %v702
    %v704 = vpop.xlane.xlu0 %703
    %v705 = vsel %vm43, %v683, 0.0
    %706 = vadd.xlane.f32.xlu0 %v705
    %v707 = vpop.xlane.xlu0 %706
    %v708 = vrcp.pop %v686
    %v709 = vmul.f32 %v669, %v708
    %v710 = vrcp.pop %v689
    %v711 = vmul.f32 %v671, %v710
    %v712 = vrcp.pop %v692
    %v713 = vmul.f32 %v673, %v712
    %v714 = vrcp.pop %v695
    %v715 = vmul.f32 %v675, %v714
    %v716 = vrcp.pop %v698
    %v717 = vmul.f32 %v677, %v716
    %v718 = vrcp.pop %v701
    %v719 = vmul.f32 %v679, %v718
    %v720 = vrcp.pop %v704
    %v721 = vmul.f32 %v681, %v720
    %v722 = vrcp.pop %v707
    %v723 = vmul.f32 %v683, %v722
    %v725 = vsel %vm43, %v709, 0
    %727 = vmatprep.subr.mxu0 0.0
    %728 = vmatpush1.msra.mxu0 %v27
    %729 = vmatprep.subr.mxu0 0.0
    %730 = vmatpush1.msra.mxu0 0.0
    %731 = vmatprep.subr.mxu0 0.0
    %732 = vmatpush1.msra.mxu0 0.0
    %733 = vmatprep.subr.mxu0 0.0
    %734 = vmatpush1.msra.mxu0 0.0
    %735 = vmatprep.subr.mxu0 0.0
    %736 = vmatpush1.msra.mxu0 0.0
    %737 = vmatprep.subr.mxu0 0.0
    %738 = vmatpush1.msra.mxu0 0.0
    %739 = vmatprep.subr.mxu0 0.0
    %740 = vmatpush1.msra.mxu0 0.0
    %741 = vmatprep.subr.mxu0 0.0
    %742 = vmatpush1.msra.mxu0 0.0
    %743 = vmatprep.subr.mxu0 0.0
    %744 = vmatpush1.msra.mxu0 0.0
    %745 = vmatprep.subr.mxu0 0.0
    %746 = vmatpush1.msra.mxu0 0.0
    %747 = vmatprep.subr.mxu0 0.0
    %748 = vmatpush1.msra.mxu0 0.0
    %749 = vmatprep.subr.mxu0 0.0
    %750 = vmatpush1.msra.mxu0 0.0
    %751 = vmatprep.subr.mxu0 0.0
    %752 = vmatpush1.msra.mxu0 0.0
    %753 = vmatprep.subr.mxu0 0.0
    %754 = vmatpush1.msra.mxu0 0.0
    %755 = vmatprep.subr.mxu0 0.0
    %756 = vmatpush1.msra.mxu0 0.0
    %757 = vmatprep.subr.mxu0 0.0
    %758 = vmatpush1.msra.mxu0 0.0
    %759 = vmatprep.subr.mxu0 0.0
    %760 = vmatpush1.msra.mxu0 0.0
    %761 = vmatprep.subr.mxu0 0.0
    %762 = vmatpush1.msra.mxu0 0.0
    %763 = vmatprep.subr.mxu0 0.0
    %764 = vmatpush1.msra.mxu0 0.0
    %765 = vmatprep.subr.mxu0 0.0
    %766 = vmatpush1.msra.mxu0 0.0
    %767 = vmatprep.subr.mxu0 0.0
    %768 = vmatpush1.msra.mxu0 0.0
    %769 = vmatprep.subr.mxu0 0.0
    %770 = vmatpush1.msra.mxu0 0.0
    %771 = vmatprep.subr.mxu0 0.0
    %772 = vmatpush1.msra.mxu0 0.0
    %773 = vmatprep.subr.mxu0 0.0
    %774 = vmatpush1.msra.mxu0 0.0
    %775 = vmatprep.subr.mxu0 0.0
    %776 = vmatpush1.msra.mxu0 0.0
    %777 = vmatprep.subr.mxu0 0.0
    %778 = vmatpush1.msra.mxu0 0.0
    %779 = vmatprep.subr.mxu0 0.0
    %780 = vmatpush1.msra.mxu0 0.0
    %781 = vmatprep.subr.mxu0 0.0
    %782 = vmatpush1.msra.mxu0 0.0
    %783 = vmatprep.subr.mxu0 0.0
    %784 = vmatpush1.msra.mxu0 0.0
    %785 = vmatprep.subr.mxu0 0.0
    %786 = vmatpush1.msra.mxu0 0.0
    %787 = vmatprep.subr.mxu0 0.0
    %788 = vmatpush1.msra.mxu0 0.0
    %789 = vmatprep.subr.mxu0 0.0
    %790 = vmatpush1.msra.mxu0 0.0
    %791 = vmatprep.mubr.f32.mxu0 0.0
    %792 = vmatmul.mubr.f32.gmra.mrb[0].mxu0 %v725
    %v793 = vpop.f32.mrb[0].mxu0
    %v794 = vadd.f32 0.0, %v793
    %v795 = vpop.f32.mrb[0].mxu0
    %796 = vdwg.mxu0
    %v798 = vsel %vm43, %v711, 0
    %800 = vmatprep.subr.mxu0 0.0
    %801 = vmatpush1.msra.mxu0 %v28
    %802 = vmatprep.subr.mxu0 0.0
    %803 = vmatpush1.msra.mxu0 0.0
    %804 = vmatprep.subr.mxu0 0.0
    %805 = vmatpush1.msra.mxu0 0.0
    %806 = vmatprep.subr.mxu0 0.0
    %807 = vmatpush1.msra.mxu0 0.0
    %808 = vmatprep.subr.mxu0 0.0
    %809 = vmatpush1.msra.mxu0 0.0
    %810 = vmatprep.subr.mxu0 0.0
    %811 = vmatpush1.msra.mxu0 0.0
    %812 = vmatprep.subr.mxu0 0.0
    %813 = vmatpush1.msra.mxu0 0.0
    %814 = vmatprep.subr.mxu0 0.0
    %815 = vmatpush1.msra.mxu0 0.0
    %816 = vmatprep.subr.mxu0 0.0
    %817 = vmatpush1.msra.mxu0 0.0
    %818 = vmatprep.subr.mxu0 0.0
    %819 = vmatpush1.msra.mxu0 0.0
    %820 = vmatprep.subr.mxu0 0.0
    %821 = vmatpush1.msra.mxu0 0.0
    %822 = vmatprep.subr.mxu0 0.0
    %823 = vmatpush1.msra.mxu0 0.0
    %824 = vmatprep.subr.mxu0 0.0
    %825 = vmatpush1.msra.mxu0 0.0
    %826 = vmatprep.subr.mxu0 0.0
    %827 = vmatpush1.msra.mxu0 0.0
    %828 = vmatprep.subr.mxu0 0.0
    %829 = vmatpush1.msra.mxu0 0.0
    %830 = vmatprep.subr.mxu0 0.0
    %831 = vmatpush1.msra.mxu0 0.0
    %832 = vmatprep.subr.mxu0 0.0
    %833 = vmatpush1.msra.mxu0 0.0
    %834 = vmatprep.subr.mxu0 0.0
    %835 = vmatpush1.msra.mxu0 0.0
    %836 = vmatprep.subr.mxu0 0.0
    %837 = vmatpush1.msra.mxu0 0.0
    %838 = vmatprep.subr.mxu0 0.0
    %839 = vmatpush1.msra.mxu0 0.0
    %840 = vmatprep.subr.mxu0 0.0
    %841 = vmatpush1.msra.mxu0 0.0
    %842 = vmatprep.subr.mxu0 0.0
    %843 = vmatpush1.msra.mxu0 0.0
    %844 = vmatprep.subr.mxu0 0.0
    %845 = vmatpush1.msra.mxu0 0.0
    %846 = vmatprep.subr.mxu0 0.0
    %847 = vmatpush1.msra.mxu0 0.0
    %848 = vmatprep.subr.mxu0 0.0
    %849 = vmatpush1.msra.mxu0 0.0
    %850 = vmatprep.subr.mxu0 0.0
    %851 = vmatpush1.msra.mxu0 0.0
    %852 = vmatprep.subr.mxu0 0.0
    %853 = vmatpush1.msra.mxu0 0.0
    %854 = vmatprep.subr.mxu0 0.0
    %855 = vmatpush1.msra.mxu0 0.0
    %856 = vmatprep.subr.mxu0 0.0
    %857 = vmatpush1.msra.mxu0 0.0
    %858 = vmatprep.subr.mxu0 0.0
    %859 = vmatpush1.msra.mxu0 0.0
    %860 = vmatprep.subr.mxu0 0.0
    %861 = vmatpush1.msra.mxu0 0.0
    %862 = vmatprep.subr.mxu0 0.0
    %863 = vmatpush1.msra.mxu0 0.0
    %864 = vmatprep.mubr.f32.mxu0 0.0
    %865 = vmatmul.mubr.f32.gmra.mrb[0].mxu0 %v798
    %v866 = vpop.f32.mrb[0].mxu0
    %v867 = vadd.f32 0.0, %v866
    %v868 = vpop.f32.mrb[0].mxu0
    %869 = vdwg.mxu0
    %v871 = vsel %vm43, %v713, 0
    %873 = vmatprep.subr.mxu0 0.0
    %874 = vmatpush1.msra.mxu0 %v29
    %875 = vmatprep.subr.mxu0 0.0
    %876 = vmatpush1.msra.mxu0 0.0
    %877 = vmatprep.subr.mxu0 0.0
    %878 = vmatpush1.msra.mxu0 0.0
    %879 = vmatprep.subr.mxu0 0.0
    %880 = vmatpush1.msra.mxu0 0.0
    %881 = vmatprep.subr.mxu0 0.0
    %882 = vmatpush1.msra.mxu0 0.0
    %883 = vmatprep.subr.mxu0 0.0
    %884 = vmatpush1.msra.mxu0 0.0
    %885 = vmatprep.subr.mxu0 0.0
    %886 = vmatpush1.msra.mxu0 0.0
    %887 = vmatprep.subr.mxu0 0.0
    %888 = vmatpush1.msra.mxu0 0.0
    %889 = vmatprep.subr.mxu0 0.0
    %890 = vmatpush1.msra.mxu0 0.0
    %891 = vmatprep.subr.mxu0 0.0
    %892 = vmatpush1.msra.mxu0 0.0
    %893 = vmatprep.subr.mxu0 0.0
    %894 = vmatpush1.msra.mxu0 0.0
    %895 = vmatprep.subr.mxu0 0.0
    %896 = vmatpush1.msra.mxu0 0.0
    %897 = vmatprep.subr.mxu0 0.0
    %898 = vmatpush1.msra.mxu0 0.0
    %899 = vmatprep.subr.mxu0 0.0
    %900 = vmatpush1.msra.mxu0 0.0
    %901 = vmatprep.subr.mxu0 0.0
    %902 = vmatpush1.msra.mxu0 0.0
    %903 = vmatprep.subr.mxu0 0.0
    %904 = vmatpush1.msra.mxu0 0.0
    %905 = vmatprep.subr.mxu0 0.0
    %906 = vmatpush1.msra.mxu0 0.0
    %907 = vmatprep.subr.mxu0 0.0
    %908 = vmatpush1.msra.mxu0 0.0
    %909 = vmatprep.subr.mxu0 0.0
    %910 = vmatpush1.msra.mxu0 0.0
    %911 = vmatprep.subr.mxu0 0.0
    %912 = vmatpush1.msra.mxu0 0.0
    %913 = vmatprep.subr.mxu0 0.0
    %914 = vmatpush1.msra.mxu0 0.0
    %915 = vmatprep.subr.mxu0 0.0
    %916 = vmatpush1.msra.mxu0 0.0
    %917 = vmatprep.subr.mxu0 0.0
    %918 = vmatpush1.msra.mxu0 0.0
    %919 = vmatprep.subr.mxu0 0.0
    %920 = vmatpush1.msra.mxu0 0.0
    %921 = vmatprep.subr.mxu0 0.0
    %922 = vmatpush1.msra.mxu0 0.0
    %923 = vmatprep.subr.mxu0 0.0
    %924 = vmatpush1.msra.mxu0 0.0
    %925 = vmatprep.subr.mxu0 0.0
    %926 = vmatpush1.msra.mxu0 0.0
    %927 = vmatprep.subr.mxu0 0.0
    %928 = vmatpush1.msra.mxu0 0.0
    %929 = vmatprep.subr.mxu0 0.0
    %930 = vmatpush1.msra.mxu0 0.0
    %931 = vmatprep.subr.mxu0 0.0
    %932 = vmatpush1.msra.mxu0 0.0
    %933 = vmatprep.subr.mxu0 0.0
    %934 = vmatpush1.msra.mxu0 0.0
    %935 = vmatprep.subr.mxu0 0.0
    %936 = vmatpush1.msra.mxu0 0.0
    %937 = vmatprep.mubr.f32.mxu0 0.0
    %938 = vmatmul.mubr.f32.gmra.mrb[0].mxu0 %v871
    %v939 = vpop.f32.mrb[0].mxu0
    %v940 = vadd.f32 0.0, %v939
    %v941 = vpop.f32.mrb[0].mxu0
    %942 = vdwg.mxu0
    %v944 = vsel %vm43, %v715, 0
    %946 = vmatprep.subr.mxu0 0.0
    %947 = vmatpush1.msra.mxu0 %v30
    %948 = vmatprep.subr.mxu0 0.0
    %949 = vmatpush1.msra.mxu0 0.0
    %950 = vmatprep.subr.mxu0 0.0
    %951 = vmatpush1.msra.mxu0 0.0
    %952 = vmatprep.subr.mxu0 0.0
    %953 = vmatpush1.msra.mxu0 0.0
    %954 = vmatprep.subr.mxu0 0.0
    %955 = vmatpush1.msra.mxu0 0.0
    %956 = vmatprep.subr.mxu0 0.0
    %957 = vmatpush1.msra.mxu0 0.0
    %958 = vmatprep.subr.mxu0 0.0
    %959 = vmatpush1.msra.mxu0 0.0
    %960 = vmatprep.subr.mxu0 0.0
    %961 = vmatpush1.msra.mxu0 0.0
    %962 = vmatprep.subr.mxu0 0.0
    %963 = vmatpush1.msra.mxu0 0.0
    %964 = vmatprep.subr.mxu0 0.0
    %965 = vmatpush1.msra.mxu0 0.0
    %966 = vmatprep.subr.mxu0 0.0
    %967 = vmatpush1.msra.mxu0 0.0
    %968 = vmatprep.subr.mxu0 0.0
    %969 = vmatpush1.msra.mxu0 0.0
    %970 = vmatprep.subr.mxu0 0.0
    %971 = vmatpush1.msra.mxu0 0.0
    %972 = vmatprep.subr.mxu0 0.0
    %973 = vmatpush1.msra.mxu0 0.0
    %974 = vmatprep.subr.mxu0 0.0
    %975 = vmatpush1.msra.mxu0 0.0
    %976 = vmatprep.subr.mxu0 0.0
    %977 = vmatpush1.msra.mxu0 0.0
    %978 = vmatprep.subr.mxu0 0.0
    %979 = vmatpush1.msra.mxu0 0.0
    %980 = vmatprep.subr.mxu0 0.0
    %981 = vmatpush1.msra.mxu0 0.0
    %982 = vmatprep.subr.mxu0 0.0
    %983 = vmatpush1.msra.mxu0 0.0
    %984 = vmatprep.subr.mxu0 0.0
    %985 = vmatpush1.msra.mxu0 0.0
    %986 = vmatprep.subr.mxu0 0.0
    %987 = vmatpush1.msra.mxu0 0.0
    %988 = vmatprep.subr.mxu0 0.0
    %989 = vmatpush1.msra.mxu0 0.0
    %990 = vmatprep.subr.mxu0 0.0
    %991 = vmatpush1.msra.mxu0 0.0
    %992 = vmatprep.subr.mxu0 0.0
    %993 = vmatpush1.msra.mxu0 0.0
    %994 = vmatprep.subr.mxu0 0.0
    %995 = vmatpush1.msra.mxu0 0.0
    %996 = vmatprep.subr.mxu0 0.0
    %997 = vmatpush1.msra.mxu0 0.0
    %998 = vmatprep.subr.mxu0 0.0
    %999 = vmatpush1.msra.mxu0 0.0
    %1000 = vmatprep.subr.mxu0 0.0
    %1001 = vmatpush1.msra.mxu0 0.0
    %1002 = vmatprep.subr.mxu0 0.0
    %1003 = vmatpush1.msra.mxu0 0.0
    %1004 = vmatprep.subr.mxu0 0.0
    %1005 = vmatpush1.msra.mxu0 0.0
    %1006 = vmatprep.subr.mxu0 0.0
    %1007 = vmatpush1.msra.mxu0 0.0
    %1008 = vmatprep.subr.mxu0 0.0
    %1009 = vmatpush1.msra.mxu0 0.0
    %1010 = vmatprep.mubr.f32.mxu0 0.0
    %1011 = vmatmul.mubr.f32.gmra.mrb[0].mxu0 %v944
    %v1012 = vpop.f32.mrb[0].mxu0
    %v1013 = vadd.f32 0.0, %v1012
    %v1014 = vpop.f32.mrb[0].mxu0
    %1015 = vdwg.mxu0
    %v1017 = vsel %vm43, %v717, 0
    %1019 = vmatprep.subr.mxu0 0.0
    %1020 = vmatpush1.msra.mxu0 %v31
    %1021 = vmatprep.subr.mxu0 0.0
    %1022 = vmatpush1.msra.mxu0 0.0
    %1023 = vmatprep.subr.mxu0 0.0
    %1024 = vmatpush1.msra.mxu0 0.0
    %1025 = vmatprep.subr.mxu0 0.0
    %1026 = vmatpush1.msra.mxu0 0.0
    %1027 = vmatprep.subr.mxu0 0.0
    %1028 = vmatpush1.msra.mxu0 0.0
    %1029 = vmatprep.subr.mxu0 0.0
    %1030 = vmatpush1.msra.mxu0 0.0
    %1031 = vmatprep.subr.mxu0 0.0
    %1032 = vmatpush1.msra.mxu0 0.0
    %1033 = vmatprep.subr.mxu0 0.0
    %1034 = vmatpush1.msra.mxu0 0.0
    %1035 = vmatprep.subr.mxu0 0.0
    %1036 = vmatpush1.msra.mxu0 0.0
    %1037 = vmatprep.subr.mxu0 0.0
    %1038 = vmatpush1.msra.mxu0 0.0
    %1039 = vmatprep.subr.mxu0 0.0
    %1040 = vmatpush1.msra.mxu0 0.0
    %1041 = vmatprep.subr.mxu0 0.0
    %1042 = vmatpush1.msra.mxu0 0.0
    %1043 = vmatprep.subr.mxu0 0.0
    %1044 = vmatpush1.msra.mxu0 0.0
    %1045 = vmatprep.subr.mxu0 0.0
    %1046 = vmatpush1.msra.mxu0 0.0
    %1047 = vmatprep.subr.mxu0 0.0
    %1048 = vmatpush1.msra.mxu0 0.0
    %1049 = vmatprep.subr.mxu0 0.0
    %1050 = vmatpush1.msra.mxu0 0.0
    %1051 = vmatprep.subr.mxu0 0.0
    %1052 = vmatpush1.msra.mxu0 0.0
    %1053 = vmatprep.subr.mxu0 0.0
    %1054 = vmatpush1.msra.mxu0 0.0
    %1055 = vmatprep.subr.mxu0 0.0
    %1056 = vmatpush1.msra.mxu0 0.0
    %1057 = vmatprep.subr.mxu0 0.0
    %1058 = vmatpush1.msra.mxu0 0.0
    %1059 = vmatprep.subr.mxu0 0.0
    %1060 = vmatpush1.msra.mxu0 0.0
    %1061 = vmatprep.subr.mxu0 0.0
    %1062 = vmatpush1.msra.mxu0 0.0
    %1063 = vmatprep.subr.mxu0 0.0
    %1064 = vmatpush1.msra.mxu0 0.0
    %1065 = vmatprep.subr.mxu0 0.0
    %1066 = vmatpush1.msra.mxu0 0.0
    %1067 = vmatprep.subr.mxu0 0.0
    %1068 = vmatpush1.msra.mxu0 0.0
    %1069 = vmatprep.subr.mxu0 0.0
    %1070 = vmatpush1.msra.mxu0 0.0
    %1071 = vmatprep.subr.mxu0 0.0
    %1072 = vmatpush1.msra.mxu0 0.0
    %1073 = vmatprep.subr.mxu0 0.0
    %1074 = vmatpush1.msra.mxu0 0.0
    %1075 = vmatprep.subr.mxu0 0.0
    %1076 = vmatpush1.msra.mxu0 0.0
    %1077 = vmatprep.subr.mxu0 0.0
    %1078 = vmatpush1.msra.mxu0 0.0
    %1079 = vmatprep.subr.mxu0 0.0
    %1080 = vmatpush1.msra.mxu0 0.0
    %1081 = vmatprep.subr.mxu0 0.0
    %1082 = vmatpush1.msra.mxu0 0.0
    %1083 = vmatprep.mubr.f32.mxu0 0.0
    %1084 = vmatmul.mubr.f32.gmra.mrb[0].mxu0 %v1017
    %v1085 = vpop.f32.mrb[0].mxu0
    %v1086 = vadd.f32 0.0, %v1085
    %v1087 = vpop.f32.mrb[0].mxu0
    %1088 = vdwg.mxu0
    %v1090 = vsel %vm43, %v719, 0
    %1092 = vmatprep.subr.mxu0 0.0
    %1093 = vmatpush1.msra.mxu0 %v32
    %1094 = vmatprep.subr.mxu0 0.0
    %1095 = vmatpush1.msra.mxu0 0.0
    %1096 = vmatprep.subr.mxu0 0.0
    %1097 = vmatpush1.msra.mxu0 0.0
    %1098 = vmatprep.subr.mxu0 0.0
    %1099 = vmatpush1.msra.mxu0 0.0
    %1100 = vmatprep.subr.mxu0 0.0
    %1101 = vmatpush1.msra.mxu0 0.0
    %1102 = vmatprep.subr.mxu0 0.0
    %1103 = vmatpush1.msra.mxu0 0.0
    %1104 = vmatprep.subr.mxu0 0.0
    %1105 = vmatpush1.msra.mxu0 0.0
    %1106 = vmatprep.subr.mxu0 0.0
    %1107 = vmatpush1.msra.mxu0 0.0
    %1108 = vmatprep.subr.mxu0 0.0
    %1109 = vmatpush1.msra.mxu0 0.0
    %1110 = vmatprep.subr.mxu0 0.0
    %1111 = vmatpush1.msra.mxu0 0.0
    %1112 = vmatprep.subr.mxu0 0.0
    %1113 = vmatpush1.msra.mxu0 0.0
    %1114 = vmatprep.subr.mxu0 0.0
    %1115 = vmatpush1.msra.mxu0 0.0
    %1116 = vmatprep.subr.mxu0 0.0
    %1117 = vmatpush1.msra.mxu0 0.0
    %1118 = vmatprep.subr.mxu0 0.0
    %1119 = vmatpush1.msra.mxu0 0.0
    %1120 = vmatprep.subr.mxu0 0.0
    %1121 = vmatpush1.msra.mxu0 0.0
    %1122 = vmatprep.subr.mxu0 0.0
    %1123 = vmatpush1.msra.mxu0 0.0
    %1124 = vmatprep.subr.mxu0 0.0
    %1125 = vmatpush1.msra.mxu0 0.0
    %1126 = vmatprep.subr.mxu0 0.0
    %1127 = vmatpush1.msra.mxu0 0.0
    %1128 = vmatprep.subr.mxu0 0.0
    %1129 = vmatpush1.msra.mxu0 0.0
    %1130 = vmatprep.subr.mxu0 0.0
    %1131 = vmatpush1.msra.mxu0 0.0
    %1132 = vmatprep.subr.mxu0 0.0
    %1133 = vmatpush1.msra.mxu0 0.0
    %1134 = vmatprep.subr.mxu0 0.0
    %1135 = vmatpush1.msra.mxu0 0.0
    %1136 = vmatprep.subr.mxu0 0.0
    %1137 = vmatpush1.msra.mxu0 0.0
    %1138 = vmatprep.subr.mxu0 0.0
    %1139 = vmatpush1.msra.mxu0 0.0
    %1140 = vmatprep.subr.mxu0 0.0
    %1141 = vmatpush1.msra.mxu0 0.0
    %1142 = vmatprep.subr.mxu0 0.0
    %1143 = vmatpush1.msra.mxu0 0.0
    %1144 = vmatprep.subr.mxu0 0.0
    %1145 = vmatpush1.msra.mxu0 0.0
    %1146 = vmatprep.subr.mxu0 0.0
    %1147 = vmatpush1.msra.mxu0 0.0
    %1148 = vmatprep.subr.mxu0 0.0
    %1149 = vmatpush1.msra.mxu0 0.0
    %1150 = vmatprep.subr.mxu0 0.0
    %1151 = vmatpush1.msra.mxu0 0.0
    %1152 = vmatprep.subr.mxu0 0.0
    %1153 = vmatpush1.msra.mxu0 0.0
    %1154 = vmatprep.subr.mxu0 0.0
    %1155 = vmatpush1.msra.mxu0 0.0
    %1156 = vmatprep.mubr.f32.mxu0 0.0
    %1157 = vmatmul.mubr.f32.gmra.mrb[0].mxu0 %v1090
    %v1158 = vpop.f32.mrb[0].mxu0
    %v1159 = vadd.f32 0.0, %v1158
    %v1160 = vpop.f32.mrb[0].mxu0
    %1161 = vdwg.mxu0
    %v1163 = vsel %vm43, %v721, 0
    %1165 = vmatprep.subr.mxu0 0.0
    %1166 = vmatpush1.msra.mxu0 %v33
    %1167 = vmatprep.subr.mxu0 0.0
    %1168 = vmatpush1.msra.mxu0 0.0
    %1169 = vmatprep.subr.mxu0 0.0
    %1170 = vmatpush1.msra.mxu0 0.0
    %1171 = vmatprep.subr.mxu0 0.0
    %1172 = vmatpush1.msra.mxu0 0.0
    %1173 = vmatprep.subr.mxu0 0.0
    %1174 = vmatpush1.msra.mxu0 0.0
    %1175 = vmatprep.subr.mxu0 0.0
    %1176 = vmatpush1.msra.mxu0 0.0
    %1177 = vmatprep.subr.mxu0 0.0
    %1178 = vmatpush1.msra.mxu0 0.0
    %1179 = vmatprep.subr.mxu0 0.0
    %1180 = vmatpush1.msra.mxu0 0.0
    %1181 = vmatprep.subr.mxu0 0.0
    %1182 = vmatpush1.msra.mxu0 0.0
    %1183 = vmatprep.subr.mxu0 0.0
    %1184 = vmatpush1.msra.mxu0 0.0
    %1185 = vmatprep.subr.mxu0 0.0
    %1186 = vmatpush1.msra.mxu0 0.0
    %1187 = vmatprep.subr.mxu0 0.0
    %1188 = vmatpush1.msra.mxu0 0.0
    %1189 = vmatprep.subr.mxu0 0.0
    %1190 = vmatpush1.msra.mxu0 0.0
    %1191 = vmatprep.subr.mxu0 0.0
    %1192 = vmatpush1.msra.mxu0 0.0
    %1193 = vmatprep.subr.mxu0 0.0
    %1194 = vmatpush1.msra.mxu0 0.0
    %1195 = vmatprep.subr.mxu0 0.0
    %1196 = vmatpush1.msra.mxu0 0.0
    %1197 = vmatprep.subr.mxu0 0.0
    %1198 = vmatpush1.msra.mxu0 0.0
    %1199 = vmatprep.subr.mxu0 0.0
    %1200 = vmatpush1.msra.mxu0 0.0
    %1201 = vmatprep.subr.mxu0 0.0
    %1202 = vmatpush1.msra.mxu0 0.0
    %1203 = vmatprep.subr.mxu0 0.0
    %1204 = vmatpush1.msra.mxu0 0.0
    %1205 = vmatprep.subr.mxu0 0.0
    %1206 = vmatpush1.msra.mxu0 0.0
    %1207 = vmatprep.subr.mxu0 0.0
    %1208 = vmatpush1.msra.mxu0 0.0
    %1209 = vmatprep.subr.mxu0 0.0
    %1210 = vmatpush1.msra.mxu0 0.0
    %1211 = vmatprep.subr.mxu0 0.0
    %1212 = vmatpush1.msra.mxu0 0.0
    %1213 = vmatprep.subr.mxu0 0.0
    %1214 = vmatpush1.msra.mxu0 0.0
    %1215 = vmatprep.subr.mxu0 0.0
    %1216 = vmatpush1.msra.mxu0 0.0
    %1217 = vmatprep.subr.mxu0 0.0
    %1218 = vmatpush1.msra.mxu0 0.0
    %1219 = vmatprep.subr.mxu0 0.0
    %1220 = vmatpush1.msra.mxu0 0.0
    %1221 = vmatprep.subr.mxu0 0.0
    %1222 = vmatpush1.msra.mxu0 0.0
    %1223 = vmatprep.subr.mxu0 0.0
    %1224 = vmatpush1.msra.mxu0 0.0
    %1225 = vmatprep.subr.mxu0 0.0
    %1226 = vmatpush1.msra.mxu0 0.0
    %1227 = vmatprep.subr.mxu0 0.0
    %1228 = vmatpush1.msra.mxu0 0.0
    %1229 = vmatprep.mubr.f32.mxu0 0.0
    %1230 = vmatmul.mubr.f32.gmra.mrb[0].mxu0 %v1163
    %v1231 = vpop.f32.mrb[0].mxu0
    %v1232 = vadd.f32 0.0, %v1231
    %v1233 = vpop.f32.mrb[0].mxu0
    %1234 = vdwg.mxu0
    %v1236 = vsel %vm43, %v723, 0
    %1238 = vmatprep.subr.mxu0 0.0
    %1239 = vmatpush1.msra.mxu0 %v34
    %1240 = vmatprep.subr.mxu0 0.0
    %1241 = vmatpush1.msra.mxu0 0.0
    %1242 = vmatprep.subr.mxu0 0.0
    %1243 = vmatpush1.msra.mxu0 0.0
    %1244 = vmatprep.subr.mxu0 0.0
    %1245 = vmatpush1.msra.mxu0 0.0
    %1246 = vmatprep.subr.mxu0 0.0
    %1247 = vmatpush1.msra.mxu0 0.0
    %1248 = vmatprep.subr.mxu0 0.0
    %1249 = vmatpush1.msra.mxu0 0.0
    %1250 = vmatprep.subr.mxu0 0.0
    %1251 = vmatpush1.msra.mxu0 0.0
    %1252 = vmatprep.subr.mxu0 0.0
    %1253 = vmatpush1.msra.mxu0 0.0
    %1254 = vmatprep.subr.mxu0 0.0
    %1255 = vmatpush1.msra.mxu0 0.0
    %1256 = vmatprep.subr.mxu0 0.0
    %1257 = vmatpush1.msra.mxu0 0.0
    %1258 = vmatprep.subr.mxu0 0.0
    %1259 = vmatpush1.msra.mxu0 0.0
    %1260 = vmatprep.subr.mxu0 0.0
    %1261 = vmatpush1.msra.mxu0 0.0
    %1262 = vmatprep.subr.mxu0 0.0
    %1263 = vmatpush1.msra.mxu0 0.0
    %1264 = vmatprep.subr.mxu0 0.0
    %1265 = vmatpush1.msra.mxu0 0.0
    %1266 = vmatprep.subr.mxu0 0.0
    %1267 = vmatpush1.msra.mxu0 0.0
    %1268 = vmatprep.subr.mxu0 0.0
    %1269 = vmatpush1.msra.mxu0 0.0
    %1270 = vmatprep.subr.mxu0 0.0
    %1271 = vmatpush1.msra.mxu0 0.0
    %1272 = vmatprep.subr.mxu0 0.0
    %1273 = vmatpush1.msra.mxu0 0.0
    %1274 = vmatprep.subr.mxu0 0.0
    %1275 = vmatpush1.msra.mxu0 0.0
    %1276 = vmatprep.subr.mxu0 0.0
    %1277 = vmatpush1.msra.mxu0 0.0
    %1278 = vmatprep.subr.mxu0 0.0
    %1279 = vmatpush1.msra.mxu0 0.0
    %1280 = vmatprep.subr.mxu0 0.0
    %1281 = vmatpush1.msra.mxu0 0.0
    %1282 = vmatprep.subr.mxu0 0.0
    %1283 = vmatpush1.msra.mxu0 0.0
    %1284 = vmatprep.subr.mxu0 0.0
    %1285 = vmatpush1.msra.mxu0 0.0
    %1286 = vmatprep.subr.mxu0 0.0
    %1287 = vmatpush1.msra.mxu0 0.0
    %1288 = vmatprep.subr.mxu0 0.0
    %1289 = vmatpush1.msra.mxu0 0.0
    %1290 = vmatprep.subr.mxu0 0.0
    %1291 = vmatpush1.msra.mxu0 0.0
    %1292 = vmatprep.subr.mxu0 0.0
    %1293 = vmatpush1.msra.mxu0 0.0
    %1294 = vmatprep.subr.mxu0 0.0
    %1295 = vmatpush1.msra.mxu0 0.0
    %1296 = vmatprep.subr.mxu0 0.0
    %1297 = vmatpush1.msra.mxu0 0.0
    %1298 = vmatprep.subr.mxu0 0.0
    %1299 = vmatpush1.msra.mxu0 0.0
    %1300 = vmatprep.subr.mxu0 0.0
    %1301 = vmatpush1.msra.mxu0 0.0
    %1302 = vmatprep.mubr.f32.mxu0 0.0
    %1303 = vmatmul.mubr.f32.gmra.mrb[0].mxu0 %v1236
    %v1304 = vpop.f32.mrb[0].mxu0
    %v1305 = vadd.f32 0.0, %v1304
    %v1306 = vpop.f32.mrb[0].mxu0
    %1307 = vdwg.mxu0
    %v1308 = vld [vmem:[%s3 + $0x8] sm:$0xff]
    %v1309 = vld [vmem:[%s3 + $0x10] sm:$0xff]
    %v1311 = vsel %vm43, %v867, 0
    %v1314 = vsel %vm43, %v1159, 0
    %1316 = vmatprep.subr.mxu0 0.0
    %1317 = vmatpush1.msra.mxu0 %v1309
    %1318 = vmatprep.subr.mxu0 0.0
    %1319 = vmatpush1.msra.mxu0 0.0
    %1320 = vmatprep.subr.mxu0 0.0
    %1321 = vmatpush1.msra.mxu0 0.0
    %1322 = vmatprep.subr.mxu0 0.0
    %1323 = vmatpush1.msra.mxu0 0.0
    %1324 = vmatprep.subr.mxu0 0.0
    %1325 = vmatpush1.msra.mxu0 0.0
    %1326 = vmatprep.subr.mxu0 0.0
    %1327 = vmatpush1.msra.mxu0 0.0
    %1328 = vmatprep.subr.mxu0 0.0
    %1329 = vmatpush1.msra.mxu0 0.0
    %1330 = vmatprep.subr.mxu0 0.0
    %1331 = vmatpush1.msra.mxu0 0.0
    %1332 = vmatprep.subr.mxu0 0.0
    %1333 = vmatpush1.msra.mxu0 0.0
    %1334 = vmatprep.subr.mxu0 0.0
    %1335 = vmatpush1.msra.mxu0 0.0
    %1336 = vmatprep.subr.mxu0 0.0
    %1337 = vmatpush1.msra.mxu0 0.0
    %1338 = vmatprep.subr.mxu0 0.0
    %1339 = vmatpush1.msra.mxu0 0.0
    %1340 = vmatprep.subr.mxu0 0.0
    %1341 = vmatpush1.msra.mxu0 0.0
    %1342 = vmatprep.subr.mxu0 0.0
    %1343 = vmatpush1.msra.mxu0 0.0
    %1344 = vmatprep.subr.mxu0 0.0
    %1345 = vmatpush1.msra.mxu0 0.0
    %1346 = vmatprep.subr.mxu0 0.0
    %1347 = vmatpush1.msra.mxu0 0.0
    %1348 = vmatprep.subr.mxu0 0.0
    %1349 = vmatpush1.msra.mxu0 0.0
    %1350 = vmatprep.subr.mxu0 0.0
    %1351 = vmatpush1.msra.mxu0 0.0
    %1352 = vmatprep.subr.mxu0 0.0
    %1353 = vmatpush1.msra.mxu0 0.0
    %1354 = vmatprep.subr.mxu0 0.0
    %1355 = vmatpush1.msra.mxu0 0.0
    %1356 = vmatprep.subr.mxu0 0.0
    %1357 = vmatpush1.msra.mxu0 0.0
    %1358 = vmatprep.subr.mxu0 0.0
    %1359 = vmatpush1.msra.mxu0 0.0
    %1360 = vmatprep.subr.mxu0 0.0
    %1361 = vmatpush1.msra.mxu0 0.0
    %1362 = vmatprep.subr.mxu0 0.0
    %1363 = vmatpush1.msra.mxu0 0.0
    %1364 = vmatprep.subr.mxu0 0.0
    %1365 = vmatpush1.msra.mxu0 0.0
    %1366 = vmatprep.subr.mxu0 0.0
    %1367 = vmatpush1.msra.mxu0 0.0
    %1368 = vmatprep.subr.mxu0 0.0
    %1369 = vmatpush1.msra.mxu0 0.0
    %1370 = vmatprep.subr.mxu0 0.0
    %1371 = vmatpush1.msra.mxu0 0.0
    %1372 = vmatprep.subr.mxu0 0.0
    %1373 = vmatpush1.msra.mxu0 0.0
    %1374 = vmatprep.subr.mxu0 0.0
    %1375 = vmatpush1.msra.mxu0 0.0
    %1376 = vmatprep.subr.mxu0 0.0
    %1377 = vmatpush1.msra.mxu0 0.0
    %1378 = vmatprep.subr.mxu0 0.0
    %1379 = vmatpush1.msra.mxu0 0.0
    %1380 = vmatprep.mubr.f32.mxu0 0.0
    %1381 = vmatmul.mubr.f32.gmra.mrb[0].mxu0 %v1311
    %v1382 = vpop.f32.mrb[0].mxu0
    %v1383 = vadd.f32 0.0, %v1382
    %v1384 = vpop.f32.mrb[0].mxu0
    %1385 = vmatprep.mubr.f32.mxu0 0.0
    %1386 = vmatmul.mubr.f32.gmra.mrb[0].mxu0 %v1314
    %v1387 = vpop.f32.mrb[0].mxu0
    %v1388 = vadd.f32 0.0, %v1387
    %v1389 = vpop.f32.mrb[0].mxu0
    %1390 = vdwg.mxu0
    %v1392 = vsel %vm43, %v794, 0
    %v1395 = vsel %vm43, %v1086, 0
    %1397 = vmatprep.subr.mxu0 0.0
    %1398 = vmatpush1.msra.mxu0 %v1308
    %1399 = vmatprep.subr.mxu0 0.0
    %1400 = vmatpush1.msra.mxu0 0.0
    %1401 = vmatprep.subr.mxu0 0.0
    %1402 = vmatpush1.msra.mxu0 0.0
    %1403 = vmatprep.subr.mxu0 0.0
    %1404 = vmatpush1.msra.mxu0 0.0
    %1405 = vmatprep.subr.mxu0 0.0
    %1406 = vmatpush1.msra.mxu0 0.0
    %1407 = vmatprep.subr.mxu0 0.0
    %1408 = vmatpush1.msra.mxu0 0.0
    %1409 = vmatprep.subr.mxu0 0.0
    %1410 = vmatpush1.msra.mxu0 0.0
    %1411 = vmatprep.subr.mxu0 0.0
    %1412 = vmatpush1.msra.mxu0 0.0
    %1413 = vmatprep.subr.mxu0 0.0
    %1414 = vmatpush1.msra.mxu0 0.0
    %1415 = vmatprep.subr.mxu0 0.0
    %1416 = vmatpush1.msra.mxu0 0.0
    %1417 = vmatprep.subr.mxu0 0.0
    %1418 = vmatpush1.msra.mxu0 0.0
    %1419 = vmatprep.subr.mxu0 0.0
    %1420 = vmatpush1.msra.mxu0 0.0
    %1421 = vmatprep.subr.mxu0 0.0
    %1422 = vmatpush1.msra.mxu0 0.0
    %1423 = vmatprep.subr.mxu0 0.0
    %1424 = vmatpush1.msra.mxu0 0.0
    %1425 = vmatprep.subr.mxu0 0.0
    %1426 = vmatpush1.msra.mxu0 0.0
    %1427 = vmatprep.subr.mxu0 0.0
    %1428 = vmatpush1.msra.mxu0 0.0
    %1429 = vmatprep.subr.mxu0 0.0
    %1430 = vmatpush1.msra.mxu0 0.0
    %1431 = vmatprep.subr.mxu0 0.0
    %1432 = vmatpush1.msra.mxu0 0.0
    %1433 = vmatprep.subr.mxu0 0.0
    %1434 = vmatpush1.msra.mxu0 0.0
    %1435 = vmatprep.subr.mxu0 0.0
    %1436 = vmatpush1.msra.mxu0 0.0
    %1437 = vmatprep.subr.mxu0 0.0
    %1438 = vmatpush1.msra.mxu0 0.0
    %1439 = vmatprep.subr.mxu0 0.0
    %1440 = vmatpush1.msra.mxu0 0.0
    %1441 = vmatprep.subr.mxu0 0.0
    %1442 = vmatpush1.msra.mxu0 0.0
    %1443 = vmatprep.subr.mxu0 0.0
    %1444 = vmatpush1.msra.mxu0 0.0
    %1445 = vmatprep.subr.mxu0 0.0
    %1446 = vmatpush1.msra.mxu0 0.0
    %1447 = vmatprep.subr.mxu0 0.0
    %1448 = vmatpush1.msra.mxu0 0.0
    %1449 = vmatprep.subr.mxu0 0.0
    %1450 = vmatpush1.msra.mxu0 0.0
    %1451 = vmatprep.subr.mxu0 0.0
    %1452 = vmatpush1.msra.mxu0 0.0
    %1453 = vmatprep.subr.mxu0 0.0
    %1454 = vmatpush1.msra.mxu0 0.0
    %1455 = vmatprep.subr.mxu0 0.0
    %1456 = vmatpush1.msra.mxu0 0.0
    %1457 = vmatprep.subr.mxu0 0.0
    %1458 = vmatpush1.msra.mxu0 0.0
    %1459 = vmatprep.subr.mxu0 0.0
    %1460 = vmatpush1.msra.mxu0 0.0
    %1461 = vmatprep.mubr.f32.mxu0 0.0
    %1462 = vmatmul.mubr.f32.gmra.mrb[0].mxu0 %v1392
    %v1463 = vpop.f32.mrb[0].mxu0
    %v1464 = vadd.f32 %v1383, %v1463
    %v1465 = vpop.f32.mrb[0].mxu0
    %1466 = vmatprep.mubr.f32.mxu0 0.0
    %1467 = vmatmul.mubr.f32.gmra.mrb[0].mxu0 %v1395
    %v1468 = vpop.f32.mrb[0].mxu0
    %v1469 = vadd.f32 %v1388, %v1468
    %v1470 = vpop.f32.mrb[0].mxu0
    %1471 = vdwg.mxu0
    %v1472 = vld [vmem:[%s3 + $0x18] sm:$0xff]
    %v1474 = vsel %vm43, %v940, 0
    %v1477 = vsel %vm43, %v1232, 0
    %1479 = vmatprep.subr.mxu0 0.0
    %1480 = vmatpush1.msra.mxu0 %v1472
    %1481 = vmatprep.subr.mxu0 0.0
    %1482 = vmatpush1.msra.mxu0 0.0
    %1483 = vmatprep.subr.mxu0 0.0
    %1484 = vmatpush1.msra.mxu0 0.0
    %1485 = vmatprep.subr.mxu0 0.0
    %1486 = vmatpush1.msra.mxu0 0.0
    %1487 = vmatprep.subr.mxu0 0.0
    %1488 = vmatpush1.msra.mxu0 0.0
    %1489 = vmatprep.subr.mxu0 0.0
    %1490 = vmatpush1.msra.mxu0 0.0
    %1491 = vmatprep.subr.mxu0 0.0
    %1492 = vmatpush1.msra.mxu0 0.0
    %1493 = vmatprep.subr.mxu0 0.0
    %1494 = vmatpush1.msra.mxu0 0.0
    %1495 = vmatprep.subr.mxu0 0.0
    %1496 = vmatpush1.msra.mxu0 0.0
    %1497 = vmatprep.subr.mxu0 0.0
    %1498 = vmatpush1.msra.mxu0 0.0
    %1499 = vmatprep.subr.mxu0 0.0
    %1500 = vmatpush1.msra.mxu0 0.0
    %1501 = vmatprep.subr.mxu0 0.0
    %1502 = vmatpush1.msra.mxu0 0.0
    %1503 = vmatprep.subr.mxu0 0.0
    %1504 = vmatpush1.msra.mxu0 0.0
    %1505 = vmatprep.subr.mxu0 0.0
    %1506 = vmatpush1.msra.mxu0 0.0
    %1507 = vmatprep.subr.mxu0 0.0
    %1508 = vmatpush1.msra.mxu0 0.0
    %1509 = vmatprep.subr.mxu0 0.0
    %1510 = vmatpush1.msra.mxu0 0.0
    %1511 = vmatprep.subr.mxu0 0.0
    %1512 = vmatpush1.msra.mxu0 0.0
    %1513 = vmatprep.subr.mxu0 0.0
    %1514 = vmatpush1.msra.mxu0 0.0
    %1515 = vmatprep.subr.mxu0 0.0
    %1516 = vmatpush1.msra.mxu0 0.0
    %1517 = vmatprep.subr.mxu0 0.0
    %1518 = vmatpush1.msra.mxu0 0.0
    %1519 = vmatprep.subr.mxu0 0.0
    %1520 = vmatpush1.msra.mxu0 0.0
    %1521 = vmatprep.subr.mxu0 0.0
    %1522 = vmatpush1.msra.mxu0 0.0
    %1523 = vmatprep.subr.mxu0 0.0
    %1524 = vmatpush1.msra.mxu0 0.0
    %1525 = vmatprep.subr.mxu0 0.0
    %1526 = vmatpush1.msra.mxu0 0.0
    %1527 = vmatprep.subr.mxu0 0.0
    %1528 = vmatpush1.msra.mxu0 0.0
    %1529 = vmatprep.subr.mxu0 0.0
    %1530 = vmatpush1.msra.mxu0 0.0
    %1531 = vmatprep.subr.mxu0 0.0
    %1532 = vmatpush1.msra.mxu0 0.0
    %1533 = vmatprep.subr.mxu0 0.0
    %1534 = vmatpush1.msra.mxu0 0.0
    %1535 = vmatprep.subr.mxu0 0.0
    %1536 = vmatpush1.msra.mxu0 0.0
    %1537 = vmatprep.subr.mxu0 0.0
    %1538 = vmatpush1.msra.mxu0 0.0
    %1539 = vmatprep.subr.mxu0 0.0
    %1540 = vmatpush1.msra.mxu0 0.0
    %1541 = vmatprep.subr.mxu0 0.0
    %1542 = vmatpush1.msra.mxu0 0.0
    %1543 = vmatprep.mubr.f32.mxu0 0.0
    %1544 = vmatmul.mubr.f32.gmra.mrb[0].mxu0 %v1474
    %v1545 = vpop.f32.mrb[0].mxu0
    %v1546 = vadd.f32 0.0, %v1545
    %v1547 = vpop.f32.mrb[0].mxu0
    %1548 = vmatprep.mubr.f32.mxu0 0.0
    %1549 = vmatmul.mubr.f32.gmra.mrb[0].mxu0 %v1477
    %v1550 = vpop.f32.mrb[0].mxu0
    %v1551 = vadd.f32 0.0, %v1550
    %v1552 = vpop.f32.mrb[0].mxu0
    %1553 = vdwg.mxu0
    %v1554 = vadd.f32 %v1464, %v1546
    %v1555 = vadd.f32 %v1469, %v1551
    %v1556 = vld [vmem:[%s3 + $0x20] sm:$0xff]
    %v1558 = vsel %vm43, %v1013, 0
    %v1561 = vsel %vm43, %v1305, 0
    %1563 = vmatprep.subr.mxu0 0.0
    %1564 = vmatpush1.msra.mxu0 %v1556
    %1565 = vmatprep.subr.mxu0 0.0
    %1566 = vmatpush1.msra.mxu0 0.0
    %1567 = vmatprep.subr.mxu0 0.0
    %1568 = vmatpush1.msra.mxu0 0.0
    %1569 = vmatprep.subr.mxu0 0.0
    %1570 = vmatpush1.msra.mxu0 0.0
    %1571 = vmatprep.subr.mxu0 0.0
    %1572 = vmatpush1.msra.mxu0 0.0
    %1573 = vmatprep.subr.mxu0 0.0
    %1574 = vmatpush1.msra.mxu0 0.0
    %1575 = vmatprep.subr.mxu0 0.0
    %1576 = vmatpush1.msra.mxu0 0.0
    %1577 = vmatprep.subr.mxu0 0.0
    %1578 = vmatpush1.msra.mxu0 0.0
    %1579 = vmatprep.subr.mxu0 0.0
    %1580 = vmatpush1.msra.mxu0 0.0
    %1581 = vmatprep.subr.mxu0 0.0
    %1582 = vmatpush1.msra.mxu0 0.0
    %1583 = vmatprep.subr.mxu0 0.0
    %1584 = vmatpush1.msra.mxu0 0.0
    %1585 = vmatprep.subr.mxu0 0.0
    %1586 = vmatpush1.msra.mxu0 0.0
    %1587 = vmatprep.subr.mxu0 0.0
    %1588 = vmatpush1.msra.mxu0 0.0
    %1589 = vmatprep.subr.mxu0 0.0
    %1590 = vmatpush1.msra.mxu0 0.0
    %1591 = vmatprep.subr.mxu0 0.0
    %1592 = vmatpush1.msra.mxu0 0.0
    %1593 = vmatprep.subr.mxu0 0.0
    %1594 = vmatpush1.msra.mxu0 0.0
    %1595 = vmatprep.subr.mxu0 0.0
    %1596 = vmatpush1.msra.mxu0 0.0
    %1597 = vmatprep.subr.mxu0 0.0
    %1598 = vmatpush1.msra.mxu0 0.0
    %1599 = vmatprep.subr.mxu0 0.0
    %1600 = vmatpush1.msra.mxu0 0.0
    %1601 = vmatprep.subr.mxu0 0.0
    %1602 = vmatpush1.msra.mxu0 0.0
    %1603 = vmatprep.subr.mxu0 0.0
    %1604 = vmatpush1.msra.mxu0 0.0
    %1605 = vmatprep.subr.mxu0 0.0
    %1606 = vmatpush1.msra.mxu0 0.0
    %1607 = vmatprep.subr.mxu0 0.0
    %1608 = vmatpush1.msra.mxu0 0.0
    %1609 = vmatprep.subr.mxu0 0.0
    %1610 = vmatpush1.msra.mxu0 0.0
    %1611 = vmatprep.subr.mxu0 0.0
    %1612 = vmatpush1.msra.mxu0 0.0
    %1613 = vmatprep.subr.mxu0 0.0
    %1614 = vmatpush1.msra.mxu0 0.0
    %1615 = vmatprep.subr.mxu0 0.0
    %1616 = vmatpush1.msra.mxu0 0.0
    %1617 = vmatprep.subr.mxu0 0.0
    %1618 = vmatpush1.msra.mxu0 0.0
    %1619 = vmatprep.subr.mxu0 0.0
    %1620 = vmatpush1.msra.mxu0 0.0
    %1621 = vmatprep.subr.mxu0 0.0
    %1622 = vmatpush1.msra.mxu0 0.0
    %1623 = vmatprep.subr.mxu0 0.0
    %1624 = vmatpush1.msra.mxu0 0.0
    %1625 = vmatprep.subr.mxu0 0.0
    %1626 = vmatpush1.msra.mxu0 0.0
    %1627 = vmatprep.mubr.f32.mxu0 0.0
    %1628 = vmatmul.mubr.f32.gmra.mrb[0].mxu0 %v1558
    %v1629 = vpop.f32.mrb[0].mxu0
    %v1630 = vadd.f32 0.0, %v1629
    %v1631 = vpop.f32.mrb[0].mxu0
    %1632 = vmatprep.mubr.f32.mxu0 0.0
    %1633 = vmatmul.mubr.f32.gmra.mrb[0].mxu0 %v1561
    %v1634 = vpop.f32.mrb[0].mxu0
    %v1635 = vadd.f32 0.0, %v1634
    %v1636 = vpop.f32.mrb[0].mxu0
    %1637 = vdwg.mxu0
    %v1638 = vadd.f32 %v1554, %v1630
    %v1639 = vadd.f32 %v1555, %v1635
    %v1640 = vld [vmem:[%s3] sm:$0x1]
    %v1641 = vlaneseq
    %v1642 = vshrl.u32 %v1641, 7
    %v1643 = vsub.s32 0, %v1642
    %v1644 = vrot.slane %v1640, %v1643
    %v1645 = vadd.f32 %v1638, %v1644
    %v1646 = vadd.f32 %v1639, %v1644
    %v1647 = vld [vmem:[%s2] sm:$0xff]
    %v1648 = vld [vmem:[%s2 + $0x8] sm:$0xff]
    %v1649 = vadd.f32 %v1645, %v1647
    %v1650 = vadd.f32 %v1646, %v1648
    %vm1651 = vcmask 261120
    %v1652 = vsel %vm1651, %v1649, 0.0
    %1653 = vadd.xlane.f32.xlu0 %v1652
    %v1654 = vpop.xlane.xlu0 %1653
    %v1655 = vsel %vm1651, %v1650, 0.0
    %1656 = vadd.xlane.f32.xlu0 %v1655
    %v1657 = vpop.xlane.xlu0 %1656
    %v1658 = vrcp.pop 32.0
    %v1659 = vmul.f32 %v1654, %v1658
    %v1660 = vmul.f32 %v1657, %v1658
    %v1661 = vsub.f32 %v1649, %v1659
    %v1662 = vsub.f32 %v1650, %v1660
    %v1663 = vmul.f32 %v1661, %v1661
    %v1664 = vmul.f32 %v1662, %v1662
    %v1665 = vsel %vm1651, %v1663, 0.0
    %1666 = vadd.xlane.f32.xlu0 %v1665
    %v1667 = vpop.xlane.xlu0 %1666
    %v1668 = vsel %vm1651, %v1664, 0.0
    %1669 = vadd.xlane.f32.xlu0 %v1668
    %v1670 = vpop.xlane.xlu0 %1669
    %v1671 = vmul.f32 %v1667, %v1658
    %v1672 = vmul.f32 %v1670, %v1658
    %v1673 = vadd.f32 %v1671, 1e-05
    %v1674 = vadd.f32 %v1672, 1e-05
    %v1675 = vrsqrt.pop %v1673
    %v1676 = vrsqrt.pop %v1674
    %v1677 = vmul.f32 %v1661, %v1675
    %v1678 = vmul.f32 %v1662, %v1676
    %v1679 = vld [vmem:[%s3 + $0x1] sm:$0x1]
    %v1680 = vlaneseq
    %v1681 = vshrl.u32 %v1680, 7
    %v1682 = vsub.s32 0, %v1681
    %v1683 = vrot.slane %v1679, %v1682
    %v1684 = vmul.f32 %v1677, %v1683
    %v1685 = vmul.f32 %v1678, %v1683
    %v1686 = vld [vmem:[%s3 + $0x2] sm:$0x1]
    %v1687 = vlaneseq
    %v1688 = vshrl.u32 %v1687, 7
    %v1689 = vsub.s32 0, %v1688
    %v1690 = vrot.slane %v1686, %v1689
    %v1691 = vadd.f32 %v1684, %v1690
    %v1692 = vadd.f32 %v1685, %v1690
    %v1693 = vld [vmem:[%s3 + $0x28] sm:$0xff]
    %v1694 = vld [vmem:[%s3 + $0x30] sm:$0xff]
    %v1695 = vld [vmem:[%s3 + $0x38] sm:$0xff]
    %v1696 = vld [vmem:[%s3 + $0x40] sm:$0xff]
    %v1697 = vld [vmem:[%s3 + $0x48] sm:$0xff]
    %v1698 = vld [vmem:[%s3 + $0x50] sm:$0xff]
    %v1699 = vld [vmem:[%s3 + $0x58] sm:$0xff]
    %v1700 = vld [vmem:[%s3 + $0x60] sm:$0xff]
    %v1701 = vld [vmem:[%s3 + $0x68] sm:$0xff]
    %v1702 = vld [vmem:[%s3 + $0x70] sm:$0xff]
    %v1703 = vld [vmem:[%s3 + $0x78] sm:$0xff]
    %v1704 = vld [vmem:[%s3 + $0x80] sm:$0xff]
    %v1705 = vld [vmem:[%s3 + $0x3] sm:$0x1]
    %v1706 = vlaneseq
    %v1707 = vshrl.u32 %v1706, 7
    %v1708 = vsub.s32 0, %v1707
    %v1709 = vrot.slane %v1705, %v1708
    %v1711 = vsel %vm1651, %v1691, 0
    %v1714 = vsel %vm1651, %v1692, 0
    %1716 = vmatprep.subr.mxu0 0.0
    %1717 = vmatpush1.msra.mxu0 %v1693
    %1718 = vmatprep.subr.mxu0 0.0
    %1719 = vmatpush1.msra.mxu0 %v1694
    %1720 = vmatprep.subr.mxu0 0.0
    %1721 = vmatpush1.msra.mxu0 %v1695
    %1722 = vmatprep.subr.mxu0 0.0
    %1723 = vmatpush1.msra.mxu0 %v1696
    %1724 = vmatprep.subr.mxu0 0.0
    %1725 = vmatpush1.msra.mxu0 0.0
    %1726 = vmatprep.subr.mxu0 0.0
    %1727 = vmatpush1.msra.mxu0 0.0
    %1728 = vmatprep.subr.mxu0 0.0
    %1729 = vmatpush1.msra.mxu0 0.0
    %1730 = vmatprep.subr.mxu0 0.0
    %1731 = vmatpush1.msra.mxu0 0.0
    %1732 = vmatprep.subr.mxu0 0.0
    %1733 = vmatpush1.msra.mxu0 0.0
    %1734 = vmatprep.subr.mxu0 0.0
    %1735 = vmatpush1.msra.mxu0 0.0
    %1736 = vmatprep.subr.mxu0 0.0
    %1737 = vmatpush1.msra.mxu0 0.0
    %1738 = vmatprep.subr.mxu0 0.0
    %1739 = vmatpush1.msra.mxu0 0.0
    %1740 = vmatprep.subr.mxu0 0.0
    %1741 = vmatpush1.msra.mxu0 0.0
    %1742 = vmatprep.subr.mxu0 0.0
    %1743 = vmatpush1.msra.mxu0 0.0
    %1744 = vmatprep.subr.mxu0 0.0
    %1745 = vmatpush1.msra.mxu0 0.0
    %1746 = vmatprep.subr.mxu0 0.0
    %1747 = vmatpush1.msra.mxu0 0.0
    %1748 = vmatprep.subr.mxu0 0.0
    %1749 = vmatpush1.msra.mxu0 0.0
    %1750 = vmatprep.subr.mxu0 0.0
    %1751 = vmatpush1.msra.mxu0 0.0
    %1752 = vmatprep.subr.mxu0 0.0
    %1753 = vmatpush1.msra.mxu0 0.0
    %1754 = vmatprep.subr.mxu0 0.0
    %1755 = vmatpush1.msra.mxu0 0.0
    %1756 = vmatprep.subr.mxu0 0.0
    %1757 = vmatpush1.msra.mxu0 0.0
    %1758 = vmatprep.subr.mxu0 0.0
    %1759 = vmatpush1.msra.mxu0 0.0
    %1760 = vmatprep.subr.mxu0 0.0
    %1761 = vmatpush1.msra.mxu0 0.0
    %1762 = vmatprep.subr.mxu0 0.0
    %1763 = vmatpush1.msra.mxu0 0.0
    %1764 = vmatprep.subr.mxu0 0.0
    %1765 = vmatpush1.msra.mxu0 0.0
    %1766 = vmatprep.subr.mxu0 0.0
    %1767 = vmatpush1.msra.mxu0 0.0
    %1768 = vmatprep.subr.mxu0 0.0
    %1769 = vmatpush1.msra.mxu0 0.0
    %1770 = vmatprep.subr.mxu0 0.0
    %1771 = vmatpush1.msra.mxu0 0.0
    %1772 = vmatprep.subr.mxu0 0.0
    %1773 = vmatpush1.msra.mxu0 0.0
    %1774 = vmatprep.subr.mxu0 0.0
    %1775 = vmatpush1.msra.mxu0 0.0
    %1776 = vmatprep.subr.mxu0 0.0
    %1777 = vmatpush1.msra.mxu0 0.0
    %1778 = vmatprep.subr.mxu0 0.0
    %1779 = vmatpush1.msra.mxu0 0.0
    %1780 = vmatprep.mubr.f32.mxu0 0.0
    %1781 = vmatmul.mubr.f32.gmra.mrb[0].mxu0 %v1711
    %v1782 = vpop.f32.mrb[0].mxu0
    %v1783 = vadd.f32 %v1709, %v1782
    %v1784 = vpop.f32.mrb[0].mxu0
    %1785 = vmatprep.mubr.f32.mxu0 0.0
    %1786 = vmatmul.mubr.f32.gmra.mrb[0].mxu0 %v1714
    %v1787 = vpop.f32.mrb[0].mxu0
    %v1788 = vadd.f32 %v1709, %v1787
    %v1789 = vpop.f32.mrb[0].mxu0
    %1790 = vdwg.mxu0
    %v1791 = vmax.f32 %v1783, 0.0
    %v1792 = vmax.f32 %v1788, 0.0
    %v1793 = vld [vmem:[%s3 + $0x4] sm:$0x1]
    %v1794 = vlaneseq
    %v1795 = vshrl.u32 %v1794, 7
    %v1796 = vsub.s32 0, %v1795
    %v1797 = vrot.slane %v1793, %v1796
    %vm1798 = vcmask 523264
    %v1800 = vsel %vm1798, %v1791, 0
    %v1803 = vsel %vm1798, %v1792, 0
    %1805 = vmatprep.subr.mxu0 0.0
    %1806 = vmatpush1.msra.mxu0 %v1697
    %1807 = vmatprep.subr.mxu0 0.0
    %1808 = vmatpush1.msra.mxu0 %v1698
    %1809 = vmatprep.subr.mxu0 0.0
    %1810 = vmatpush1.msra.mxu0 %v1699
    %1811 = vmatprep.subr.mxu0 0.0
    %1812 = vmatpush1.msra.mxu0 %v1700
    %1813 = vmatprep.subr.mxu0 0.0
    %1814 = vmatpush1.msra.mxu0 %v1701
    %1815 = vmatprep.subr.mxu0 0.0
    %1816 = vmatpush1.msra.mxu0 %v1702
    %1817 = vmatprep.subr.mxu0 0.0
    %1818 = vmatpush1.msra.mxu0 %v1703
    %1819 = vmatprep.subr.mxu0 0.0
    %1820 = vmatpush1.msra.mxu0 %v1704
    %1821 = vmatprep.subr.mxu0 0.0
    %1822 = vmatpush1.msra.mxu0 0.0
    %1823 = vmatprep.subr.mxu0 0.0
    %1824 = vmatpush1.msra.mxu0 0.0
    %1825 = vmatprep.subr.mxu0 0.0
    %1826 = vmatpush1.msra.mxu0 0.0
    %1827 = vmatprep.subr.mxu0 0.0
    %1828 = vmatpush1.msra.mxu0 0.0
    %1829 = vmatprep.subr.mxu0 0.0
    %1830 = vmatpush1.msra.mxu0 0.0
    %1831 = vmatprep.subr.mxu0 0.0
    %1832 = vmatpush1.msra.mxu0 0.0
    %1833 = vmatprep.subr.mxu0 0.0
    %1834 = vmatpush1.msra.mxu0 0.0
    %1835 = vmatprep.subr.mxu0 0.0
    %1836 = vmatpush1.msra.mxu0 0.0
    %1837 = vmatprep.subr.mxu0 0.0
    %1838 = vmatpush1.msra.mxu0 0.0
    %1839 = vmatprep.subr.mxu0 0.0
    %1840 = vmatpush1.msra.mxu0 0.0
    %1841 = vmatprep.subr.mxu0 0.0
    %1842 = vmatpush1.msra.mxu0 0.0
    %1843 = vmatprep.subr.mxu0 0.0
    %1844 = vmatpush1.msra.mxu0 0.0
    %1845 = vmatprep.subr.mxu0 0.0
    %1846 = vmatpush1.msra.mxu0 0.0
    %1847 = vmatprep.subr.mxu0 0.0
    %1848 = vmatpush1.msra.mxu0 0.0
    %1849 = vmatprep.subr.mxu0 0.0
    %1850 = vmatpush1.msra.mxu0 0.0
    %1851 = vmatprep.subr.mxu0 0.0
    %1852 = vmatpush1.msra.mxu0 0.0
    %1853 = vmatprep.subr.mxu0 0.0
    %1854 = vmatpush1.msra.mxu0 0.0
    %1855 = vmatprep.subr.mxu0 0.0
    %1856 = vmatpush1.msra.mxu0 0.0
    %1857 = vmatprep.subr.mxu0 0.0
    %1858 = vmatpush1.msra.mxu0 0.0
    %1859 = vmatprep.subr.mxu0 0.0
    %1860 = vmatpush1.msra.mxu0 0.0
    %1861 = vmatprep.subr.mxu0 0.0
    %1862 = vmatpush1.msra.mxu0 0.0
    %1863 = vmatprep.subr.mxu0 0.0
    %1864 = vmatpush1.msra.mxu0 0.0
    %1865 = vmatprep.subr.mxu0 0.0
    %1866 = vmatpush1.msra.mxu0 0.0
    %1867 = vmatprep.subr.mxu0 0.0
    %1868 = vmatpush1.msra.mxu0 0.0
    %1869 = vmatprep.mubr.f32.mxu0 0.0
    %1870 = vmatmul.mubr.f32.gmra.mrb[0].mxu0 %v1800
    %v1871 = vpop.f32.mrb[0].mxu0
    %v1872 = vadd.f32 %v1797, %v1871
    %v1873 = vpop.f32.mrb[0].mxu0
    %1874 = vmatprep.mubr.f32.mxu0 0.0
    %1875 = vmatmul.mubr.f32.gmra.mrb[0].mxu0 %v1803
    %v1876 = vpop.f32.mrb[0].mxu0
    %v1877 = vadd.f32 %v1797, %v1876
    %v1878 = vpop.f32.mrb[0].mxu0
    %1879 = vdwg.mxu0
    %v1880 = vadd.f32 %v1872, %v1691
    %v1881 = vadd.f32 %v1877, %v1692
    %v1882 = vsel %vm1651, %v1880, 0.0
    %1883 = vadd.xlane.f32.xlu0 %v1882
    %v1884 = vpop.xlane.xlu0 %1883
    %v1885 = vsel %vm1651, %v1881, 0.0
    %1886 = vadd.xlane.f32.xlu0 %v1885
    %v1887 = vpop.xlane.xlu0 %1886
    %v1888 = vmul.f32 %v1884, %v1658
    %v1889 = vmul.f32 %v1887, %v1658
    %v1890 = vsub.f32 %v1880, %v1888
    %v1891 = vsub.f32 %v1881, %v1889
    %v1892 = vmul.f32 %v1890, %v1890
    %v1893 = vmul.f32 %v1891, %v1891
    %v1894 = vsel %vm1651, %v1892, 0.0
    %1895 = vadd.xlane.f32.xlu0 %v1894
    %v1896 = vpop.xlane.xlu0 %1895
    %v1897 = vsel %vm1651, %v1893, 0.0
    %1898 = vadd.xlane.f32.xlu0 %v1897
    %v1899 = vpop.xlane.xlu0 %1898
    %v1900 = vmul.f32 %v1896, %v1658
    %v1901 = vmul.f32 %v1899, %v1658
    %v1902 = vadd.f32 %v1900, 1e-05
    %v1903 = vadd.f32 %v1901, 1e-05
    %v1904 = vrsqrt.pop %v1902
    %v1905 = vrsqrt.pop %v1903
    %v1906 = vmul.f32 %v1890, %v1904
    %v1907 = vmul.f32 %v1891, %v1905
    %v1908 = vld [vmem:[%s3 + $0x5] sm:$0x1]
    %v1909 = vlaneseq
    %v1910 = vshrl.u32 %v1909, 7
    %v1911 = vsub.s32 0, %v1910
    %v1912 = vrot.slane %v1908, %v1911
    %v1913 = vmul.f32 %v1906, %v1912
    %v1914 = vmul.f32 %v1907, %v1912
    %v1915 = vld [vmem:[%s3 + $0x6] sm:$0x1]
    %v1916 = vlaneseq
    %v1917 = vshrl.u32 %v1916, 7
    %v1918 = vsub.s32 0, %v1917
    %v1919 = vrot.slane %v1915, %v1918
    %v1920 = vadd.f32 %v1913, %v1919
    %v1921 = vadd.f32 %v1914, %v1919
    %1922 = vst.msk [vmem:[#allocation2] sm:$0xff] %vm1651, %v1920
    %1923 = vst.msk [vmem:[#allocation2 + $0x8] sm:$0xff] %vm1651, %v1921
    // Predicated region
    $region18: #{transformer_encoder_block.1} parent=1 // pred_check
      _
    $region19: #{transformer_encoder_block.1} parent=1 // pred_check_branch
      %1925 = sbr.rel (0) target = $region21
    $region20: #{transformer_encoder_block.1} parent=1 // pred_region
      %s1927 = ssub.s32 256, 256
      %1928 = vsyncadd [#allocation3], %s1927
      %s1929 = sshll.u32 [#allocation2], 4
      %s1930 = int_to_ptr.vmem [resolvable:$true] %s1929
      %1935 = dma.vmem_to_hbm [thread:$0]  %s1930, 256, %s4, [#allocation3], 128, 128, 8
    $region21: #{transformer_encoder_block.1} parent=1 // pred_fallthru
      _
    // Predicated region
    $region22: #{transformer_encoder_block.1} parent=1 // pred_check
      _
    $region23: #{transformer_encoder_block.1} parent=1 // pred_check_branch
      %1937 = sbr.rel (0) target = $region25
    $region24: #{transformer_encoder_block.1} parent=1 // pred_region
      %1938 = dma.done [#allocation3], 256
    $region25: #{transformer_encoder_block.1} parent=1 // pred_fallthru
      _
    %1939 = vsyncpa [#allocation3], 1

</llo_original>
